<compile_context>
chip_gen: v7x
topology: tpu7x:2x2x1
jax: 0.10.0
libtpu: 0.0.40
codegen_flags: <defaults>
</compile_context>

<pallas_src>
import functools

import jax
import jax.numpy as jnp
from jax import lax
from jax.experimental import pallas as pl
from jax.experimental.pallas import tpu as pltpu

INPUT_DIM = 10
HIDDEN_DIM = 64
OUTPUT_DIM = 128
BN_EPS = 1e-5

PAD_IN = 16                          # input_dim padded to the bf16 sublane tile
W1_OFF = 0
W2_OFF = W1_OFF + PAD_IN             # 16
W3_OFF = W2_OFF + HIDDEN_DIM         # 80
W4_OFF = W3_OFF + HIDDEN_DIM         # 144
W_SLAB_ROWS = W4_OFF + HIDDEN_DIM    # 208


def _finalize_stats(stats_ref, src_row, dst_row, inv_b):
    """sum/sumsq rows -> mean / inv_std rows (biased variance, clamped >= 0)."""
    s = stats_ref[src_row:src_row + 1, :]
    ss = stats_ref[src_row + 1:src_row + 2, :]
    mean = s * inv_b
    var = jnp.maximum(ss * inv_b - mean * mean, 0.0)   # f32 cancellation guard
    stats_ref[dst_row:dst_row + 1, :] = mean
    stats_ref[dst_row + 1:dst_row + 2, :] = lax.rsqrt(var + BN_EPS)


def ffn_kernel(x_ref, w_ref, w5_ref, b_ref, o_ref,
               xp_ref, h1_ref, h3_ref, stats_ref, *, batch, tile_b):
    p = pl.program_id(0)                       # BN pass: 0, 1, 2
    i = pl.program_id(1)                       # batch tile
    row0 = pl.multiple_of(i * tile_b, tile_b)  # staging-buffer row offset
    inv_b = 1.0 / batch

    # ---------------- pass 0: fc1 -> relu, accumulate bn1 stats ----------------
    @pl.when(p == 0)
    def _pass0():
        @pl.when(i == 0)
        def _init():
            stats_ref[...] = jnp.zeros_like(stats_ref)

        # Pad x tile (tile_b, 10) -> (tile_b, 16) in VMEM so the packed w1
        # block stays bf16-tile aligned (free masked stores, no host pad).
        xp_ref[:, :INPUT_DIM] = x_ref[...]
        xp_ref[:, INPUT_DIM:] = jnp.zeros(
            (tile_b, PAD_IN - INPUT_DIM), xp_ref.dtype)
        x = xp_ref[...]

        w1 = w_ref[W1_OFF:W1_OFF + PAD_IN, :]          # (16, 64), rows 10:16 zero
        b1 = b_ref[0:1, :HIDDEN_DIM]
        h = jnp.dot(x, w1, preferred_element_type=jnp.float32) + b1
        h = jnp.maximum(h, 0.0)                        # fc1 -> relu
        h1_ref[pl.ds(row0, tile_b), :] = h.astype(jnp.bfloat16)
        stats_ref[0:1, :] += jnp.sum(h, axis=0, keepdims=True)
        stats_ref[1:2, :] += jnp.sum(h * h, axis=0, keepdims=True)

    # ------- pass 1: bn1 -> fc2 -> relu -> fc3, accumulate bn2 stats ----------
    @pl.when(p == 1)
    def _pass1():
        @pl.when(i == 0)
        def _finalize_bn1():
            _finalize_stats(stats_ref, 0, 2, inv_b)
            stats_ref[4:6, :] = jnp.zeros((2, HIDDEN_DIM), jnp.float32)

        mean = stats_ref[2:3, :]
        rstd = stats_ref[3:4, :]
        h1 = h1_ref[pl.ds(row0, tile_b), :].astype(jnp.float32)
        hn = ((h1 - mean) * rstd).astype(jnp.bfloat16)  # bn1 (affine folded in w2/b2)

        w2 = w_ref[W2_OFF:W2_OFF + HIDDEN_DIM, :]
        b2 = b_ref[1:2, :HIDDEN_DIM]
        h = jnp.dot(hn, w2, preferred_element_type=jnp.float32) + b2
        h = jnp.maximum(h, 0.0)                        # fc2 -> relu

        w3 = w_ref[W3_OFF:W3_OFF + HIDDEN_DIM, :]
        h = jnp.dot(h.astype(jnp.bfloat16), w3,
                    preferred_element_type=jnp.float32)  # fc3 (b3 cancelled by bn2)
        h3_ref[pl.ds(row0, tile_b), :] = h.astype(jnp.bfloat16)
        stats_ref[4:5, :] += jnp.sum(h, axis=0, keepdims=True)
        stats_ref[5:6, :] += jnp.sum(h * h, axis=0, keepdims=True)

    # --------------- pass 2: bn2 -> fc4 -> relu -> fc5 -> output --------------
    @pl.when(p == 2)
    def _pass2():
        @pl.when(i == 0)
        def _finalize_bn2():
            _finalize_stats(stats_ref, 4, 6, inv_b)

        mean = stats_ref[6:7, :]
        rstd = stats_ref[7:8, :]
        h3 = h3_ref[pl.ds(row0, tile_b), :].astype(jnp.float32)
        hn = ((h3 - mean) * rstd).astype(jnp.bfloat16)  # bn2 (affine folded in w4/b4)

        w4 = w_ref[W4_OFF:W4_OFF + HIDDEN_DIM, :]
        b4 = b_ref[2:3, :HIDDEN_DIM]
        h = jnp.dot(hn, w4, preferred_element_type=jnp.float32) + b4
        h = jnp.maximum(h, 0.0)                        # fc4 -> relu

        b5 = b_ref[3:4, :]
        out = jnp.dot(h.astype(jnp.bfloat16), w5_ref[...],
                      preferred_element_type=jnp.float32) + b5
        o_ref[...] = out.astype(o_ref.dtype)           # lane-dense 128-wide, bf16


def pack_params(p):
    """Fold BN affine params into adjacent linears, drop b3, and pack
    everything into 3 arrays (4 input operands total for the kernel)."""
    w2f = p["w2"] * p["g1"].T                    # exact fold of bn1 gamma
    b2f = p["be1"] @ p["w2"] + p["b2"]           # exact fold of bn1 beta
    w4f = p["w4"] * p["g2"].T                    # exact fold of bn2 gamma
    b4f = p["be2"] @ p["w4"] + p["b4"]           # exact fold of bn2 beta

    w1p = jnp.zeros((PAD_IN, HIDDEN_DIM), jnp.float32).at[:INPUT_DIM].set(p["w1"])
    w_slab = jnp.concatenate([w1p, w2f, p["w3"], w4f], axis=0).astype(jnp.bfloat16)
    assert w_slab.shape == (W_SLAB_ROWS, HIDDEN_DIM)
    w5 = p["w5"].astype(jnp.bfloat16)

    bias = jnp.zeros((8, OUTPUT_DIM), jnp.float32)
    bias = bias.at[0, :HIDDEN_DIM].set(p["b1"][0])
    bias = bias.at[1, :HIDDEN_DIM].set(b2f[0])
    bias = bias.at[2, :HIDDEN_DIM].set(b4f[0])
    bias = bias.at[3, :].set(p["b5"][0])
    return {"w_slab": w_slab, "w5": w5, "bias": bias}


def custom_ffn_v33(x, packed, *, tile_b=256, out_dtype=jnp.bfloat16):
    """x: (B, INPUT_DIM), packed: output of pack_params."""
    B = x.shape[0]
    assert x.shape[1] == INPUT_DIM
    tile_b = min(tile_b, B)
    assert tile_b % 16 == 0 and B % tile_b == 0, (B, tile_b)
    # TODO(synk): support ragged B by masking padded rows out of the BN stats.
    n_tiles = B // tile_b

    x_bf16 = x.astype(jnp.bfloat16)              # halve the x DMA bytes

    resident = lambda p, i: (0, 0)               # weights/bias DMA'd once
    in_specs = [
        pl.BlockSpec((tile_b, INPUT_DIM),
                     lambda p, i: (jnp.where(p == 0, i, 0), 0)),
        pl.BlockSpec((W_SLAB_ROWS, HIDDEN_DIM), resident),
        pl.BlockSpec((HIDDEN_DIM, OUTPUT_DIM), resident),
        pl.BlockSpec((8, OUTPUT_DIM), resident),
    ]
    out_specs = pl.BlockSpec((tile_b, OUTPUT_DIM),
                             lambda p, i: (jnp.where(p == 2, i, 0), 0))

    scratch_shapes = [
        pltpu.VMEM((tile_b, PAD_IN), jnp.bfloat16),     # padded x tile
        pltpu.VMEM((B, HIDDEN_DIM), jnp.bfloat16),      # h1 staging (fc1+relu)
        pltpu.VMEM((B, HIDDEN_DIM), jnp.bfloat16),      # h3 staging (fc3)
        pltpu.VMEM((8, HIDDEN_DIM), jnp.float32),       # BN sum/sumsq/mean/rstd
    ]
    # TODO(synk): for very large B (bf16 staging > ~16-24 MiB; v7x has 64 MiB
    # VMEM) spill h1/h3 to HBM via memory_space=pl.ANY + manual double-buffered
    # DMA, and shard the tile axis across v7x's 2 TCs with a cross-core BN
    # stat reduction.
    staging_bytes = 2 * B * HIDDEN_DIM * 2
    vmem_limit = int(min(100 * 1024 * 1024,
                         max(32 * 1024 * 1024, staging_bytes + (8 << 20))))

    kernel = functools.partial(ffn_kernel, batch=B, tile_b=tile_b)
    return pl.pallas_call(
        kernel,
        out_shape=jax.ShapeDtypeStruct((B, OUTPUT_DIM), out_dtype),
        grid=(3, n_tiles),                        # (BN pass, batch tile)
        in_specs=in_specs,
        out_specs=out_specs,
        scratch_shapes=scratch_shapes,
        compiler_params=pltpu.CompilerParams(
            dimension_semantics=("arbitrary", "arbitrary"),
            vmem_limit_bytes=vmem_limit),
    )(x_bf16, packed["w_slab"], packed["w5"], packed["bias"])


def init_params(key):
    """PyTorch-like uniform fan-in init. Linear weights stored transposed
    ((in,out)); biases / BN params as (1, dim) rows."""
    def linear(key, in_dim, out_dim):
        kw, kb = jax.random.split(key)
        bound = 1.0 / jnp.sqrt(in_dim)
        w = jax.random.uniform(kw, (in_dim, out_dim), jnp.float32, -bound, bound)
        b = jax.random.uniform(kb, (1, out_dim), jnp.float32, -bound, bound)
        return w, b

    keys = jax.random.split(key, 5)
    p = {}
    p["w1"], p["b1"] = linear(keys[0], INPUT_DIM, HIDDEN_DIM)
    p["w2"], p["b2"] = linear(keys[1], HIDDEN_DIM, HIDDEN_DIM)
    p["w3"], p["b3"] = linear(keys[2], HIDDEN_DIM, HIDDEN_DIM)
    p["w4"], p["b4"] = linear(keys[3], HIDDEN_DIM, HIDDEN_DIM)
    p["w5"], p["b5"] = linear(keys[4], HIDDEN_DIM, OUTPUT_DIM)
    # BatchNorm affine params: PyTorch defaults (gamma=1, beta=0).
    p["g1"] = jnp.ones((1, HIDDEN_DIM), jnp.float32)
    p["be1"] = jnp.zeros((1, HIDDEN_DIM), jnp.float32)
    p["g2"] = jnp.ones((1, HIDDEN_DIM), jnp.float32)
    p["be2"] = jnp.zeros((1, HIDDEN_DIM), jnp.float32)
    return p


def reference_forward(x, p):
    """Straightforward original-module math (no folding, two-pass BN, b3
    included), with the same bf16 matmul precision as the kernel."""
    def mm(a, w):
        return jnp.dot(a.astype(jnp.bfloat16), w.astype(jnp.bfloat16),
                       preferred_element_type=jnp.float32)
    h = jnp.maximum(mm(x, p["w1"]) + p["b1"], 0.0)
    m = h.mean(0, keepdims=True); v = ((h - m) ** 2).mean(0, keepdims=True)
    h = (h - m) / jnp.sqrt(v + BN_EPS) * p["g1"] + p["be1"]
    h = jnp.maximum(mm(h, p["w2"]) + p["b2"], 0.0)
    h = mm(h, p["w3"]) + p["b3"]
    m = h.mean(0, keepdims=True); v = ((h - m) ** 2).mean(0, keepdims=True)
    h = (h - m) / jnp.sqrt(v + BN_EPS) * p["g2"] + p["be2"]
    h = jnp.maximum(mm(h, p["w4"]) + p["b4"], 0.0)
    return mm(h, p["w5"]) + p["b5"]


if __name__ == "__main__":
    key = jax.random.PRNGKey(0)
    k_x, k_p = jax.random.split(key)

    B = 512           # batch (>1 required by BatchNorm1d training semantics)
    TILE_B = 128      # 4 batch tiles -> grid (3 passes, 4 tiles)
    x = jax.random.normal(k_x, (B, INPUT_DIM), jnp.float32)
    params = init_params(k_p)
    packed = pack_params(params)   # one-time host-side fold + pack

    out = jax.block_until_ready(custom_ffn_v33(x, packed, tile_b=TILE_B))

    ref = reference_forward(x, params)
    assert out.shape == (B, OUTPUT_DIM), out.shape
    assert jnp.allclose(out.astype(jnp.float32), ref, atol=3e-2, rtol=3e-2), \
        "mismatch vs reference"

    print("KERNEL_OK")
</pallas_src>

<mosaic_0001>
module attributes {stable_mosaic.version = 11 : i64} {
  func.func @ffn_kernel(%arg0: i32, %arg1: i32, %arg2: memref<128x10xbf16, #tpu.memory_space<vmem>>, %arg3: memref<208x64xbf16, #tpu.memory_space<vmem>>, %arg4: memref<64x128xbf16, #tpu.memory_space<vmem>>, %arg5: memref<8x128xf32, #tpu.memory_space<vmem>>, %arg6: memref<128x128xbf16, #tpu.memory_space<vmem>>, %arg7: memref<128x16xbf16, #tpu.memory_space<vmem>>, %arg8: memref<512x64xbf16, #tpu.memory_space<vmem>>, %arg9: memref<512x64xbf16, #tpu.memory_space<vmem>>, %arg10: memref<8x64xf32, #tpu.memory_space<vmem>>) attributes {dimension_semantics = [#tpu.dimension_semantics<arbitrary>, #tpu.dimension_semantics<arbitrary>], iteration_bounds = array<i64: 3, 4>, scalar_prefetch = 0 : i64, scratch_operands = 4 : i64, tpu.core_type = #tpu.core_type<tc>, window_params = [{transform_indices = @transform_0, window_bounds = array<i64: 128, 10>}, {pipeline_mode = #tpu.pipeline_mode<synchronous>, transform_indices = @transform_1, window_bounds = array<i64: 208, 64>}, {pipeline_mode = #tpu.pipeline_mode<synchronous>, transform_indices = @transform_2, window_bounds = array<i64: 64, 128>}, {pipeline_mode = #tpu.pipeline_mode<synchronous>, transform_indices = @transform_3, window_bounds = array<i64: 8, 128>}, {transform_indices = @transform_4, window_bounds = array<i64: 128, 128>}]} {
    %c128_i32 = arith.constant 128 : i32
    %0 = arith.muli %arg1, %c128_i32 : i32
    %1 = tpu.assume_multiple %0, 128 : i32
    %c0_i32 = arith.constant 0 : i32
    %2 = arith.cmpi eq, %arg0, %c0_i32 : i32
    %3 = arith.extui %2 : i1 to i32
    %c0_i32_0 = arith.constant 0 : i32
    %4 = arith.cmpi ne, %3, %c0_i32_0 : i32
    scf.if %4 {
      %c0_i32_3 = arith.constant 0 : i32
      %11 = arith.cmpi eq, %arg1, %c0_i32_3 : i32
      %12 = arith.extui %11 : i1 to i32
      %c0_i32_4 = arith.constant 0 : i32
      %13 = arith.cmpi ne, %12, %c0_i32_4 : i32
      scf.if %13 {
        %cst_27 = arith.constant 0.000000e+00 : f32
        %40 = vector.broadcast %cst_27 : f32 to vector<8x64xf32>
        %c0_28 = arith.constant 0 : index
        %c0_29 = arith.constant 0 : index
        %41 = vector.load %arg10[%c0_28, %c0_29] : memref<8x64xf32, #tpu.memory_space<vmem>>, vector<8x64xf32>
        tpu.vector_store %arg10[%c0_28, %c0_29], %40 {strides = array<i32>} : memref<8x64xf32, #tpu.memory_space<vmem>>, vector<8x64xf32>,
      } else {
      }
      %c0 = arith.constant 0 : index
      %c0_5 = arith.constant 0 : index
      %14 = vector.load %arg2[%c0, %c0_5] : memref<128x10xbf16, #tpu.memory_space<vmem>>, vector<128x10xbf16>
      %c0_6 = arith.constant 0 : index
      %c0_7 = arith.constant 0 : index
      %15 = vector.load %arg7[%c0_6, %c0_7] : memref<128x16xbf16, #tpu.memory_space<vmem>>, vector<128x10xbf16>
      tpu.vector_store %arg7[%c0_6, %c0_7], %14 {strides = array<i32>} : memref<128x16xbf16, #tpu.memory_space<vmem>>, vector<128x10xbf16>,
      %cst = arith.constant 0.000000e+00 : bf16
      %16 = vector.broadcast %cst : bf16 to vector<128x6xbf16>
      %c0_8 = arith.constant 0 : index
      %c10 = arith.constant 10 : index
      %17 = vector.load %arg7[%c0_8, %c10] : memref<128x16xbf16, #tpu.memory_space<vmem>>, vector<128x6xbf16>
      tpu.vector_store %arg7[%c0_8, %c10], %16 {strides = array<i32>} : memref<128x16xbf16, #tpu.memory_space<vmem>>, vector<128x6xbf16>,
      %c0_9 = arith.constant 0 : index
      %c0_10 = arith.constant 0 : index
      %18 = vector.load %arg7[%c0_9, %c0_10] : memref<128x16xbf16, #tpu.memory_space<vmem>>, vector<128x16xbf16>
      %c0_11 = arith.constant 0 : index
      %c0_12 = arith.constant 0 : index
      %19 = vector.load %arg3[%c0_11, %c0_12] : memref<208x64xbf16, #tpu.memory_space<vmem>>, vector<16x64xbf16>
      %c0_13 = arith.constant 0 : index
      %c0_14 = arith.constant 0 : index
      %20 = vector.load %arg5[%c0_13, %c0_14] : memref<8x128xf32, #tpu.memory_space<vmem>>, vector<1x64xf32>
      %cst_15 = arith.constant dense<0.000000e+00> : vector<128x64xf32>
      %21 = tpu.matmul %18, %19, %cst_15 {dimension_numbers = #tpu.dot_dimension_numbers<[1], [0], [0], [1], [0, 0, 1, 1], [], []>} : vector<128x16xbf16>, vector<16x64xbf16>, vector<128x64xf32> -> vector<128x64xf32>
      %22 = vector.broadcast %20 : vector<1x64xf32> to vector<128x64xf32>
      %23 = arith.addf %21, %22 : vector<128x64xf32>
      %cst_16 = arith.constant 0.000000e+00 : f32
      %24 = vector.broadcast %cst_16 : f32 to vector<128x64xf32>
      %25 = arith.maximumf %23, %24 : vector<128x64xf32>
      %26 = arith.truncf %25 : vector<128x64xf32> to vector<128x64xbf16>
      %27 = arith.index_cast %1 : i32 to index
      %c0_17 = arith.constant 0 : index
      %28 = vector.load %arg8[%27, %c0_17] : memref<512x64xbf16, #tpu.memory_space<vmem>>, vector<128x64xbf16>
      tpu.vector_store %arg8[%27, %c0_17], %26 {strides = array<i32>} : memref<512x64xbf16, #tpu.memory_space<vmem>>, vector<128x64xbf16>,
      %c0_18 = arith.constant 0 : index
      %c0_19 = arith.constant 0 : index
      %29 = vector.load %arg10[%c0_18, %c0_19] : memref<8x64xf32, #tpu.memory_space<vmem>>, vector<1x64xf32>
      %cst_20 = arith.constant dense<0.000000e+00> : vector<64xf32>
      %30 = vector.multi_reduction <add>, %25, %cst_20 [0] : vector<128x64xf32> to vector<64xf32>
      %31 = vector.shape_cast %30 : vector<64xf32> to vector<1x64xf32>
      %32 = arith.addf %29, %31 : vector<1x64xf32>
      %c0_21 = arith.constant 0 : index
      %c0_22 = arith.constant 0 : index
      %33 = vector.load %arg10[%c0_21, %c0_22] : memref<8x64xf32, #tpu.memory_space<vmem>>, vector<1x64xf32>
      tpu.vector_store %arg10[%c0_21, %c0_22], %32 {strides = array<i32>} : memref<8x64xf32, #tpu.memory_space<vmem>>, vector<1x64xf32>,
      %c1 = arith.constant 1 : index
      %c0_23 = arith.constant 0 : index
      %34 = vector.load %arg10[%c1, %c0_23] : memref<8x64xf32, #tpu.memory_space<vmem>>, vector<1x64xf32>
      %35 = arith.mulf %25, %25 : vector<128x64xf32>
      %cst_24 = arith.constant dense<0.000000e+00> : vector<64xf32>
      %36 = vector.multi_reduction <add>, %35, %cst_24 [0] : vector<128x64xf32> to vector<64xf32>
      %37 = vector.shape_cast %36 : vector<64xf32> to vector<1x64xf32>
      %38 = arith.addf %34, %37 : vector<1x64xf32>
      %c1_25 = arith.constant 1 : index
      %c0_26 = arith.constant 0 : index
      %39 = vector.load %arg10[%c1_25, %c0_26] : memref<8x64xf32, #tpu.memory_space<vmem>>, vector<1x64xf32>
      tpu.vector_store %arg10[%c1_25, %c0_26], %38 {strides = array<i32>} : memref<8x64xf32, #tpu.memory_space<vmem>>, vector<1x64xf32>,
    } else {
    }
    %c1_i32 = arith.constant 1 : i32
    %5 = arith.cmpi eq, %arg0, %c1_i32 : i32
    %6 = arith.extui %5 : i1 to i32
    %c0_i32_1 = arith.constant 0 : i32
    %7 = arith.cmpi ne, %6, %c0_i32_1 : i32
    scf.if %7 {
      %c0_i32_3 = arith.constant 0 : i32
      %11 = arith.cmpi eq, %arg1, %c0_i32_3 : i32
      %12 = arith.extui %11 : i1 to i32
      %c0_i32_4 = arith.constant 0 : i32
      %13 = arith.cmpi ne, %12, %c0_i32_4 : i32
      scf.if %13 {
        %c0_21 = arith.constant 0 : index
        %c0_22 = arith.constant 0 : index
        %48 = vector.load %arg10[%c0_21, %c0_22] : memref<8x64xf32, #tpu.memory_space<vmem>>, vector<1x64xf32>
        %c1_23 = arith.constant 1 : index
        %c0_24 = arith.constant 0 : index
        %49 = vector.load %arg10[%c1_23, %c0_24] : memref<8x64xf32, #tpu.memory_space<vmem>>, vector<1x64xf32>
        %cst_25 = arith.constant 0.001953125 : f32
        %50 = vector.broadcast %cst_25 : f32 to vector<1x64xf32>
        %51 = arith.mulf %48, %50 : vector<1x64xf32>
        %cst_26 = arith.constant 0.001953125 : f32
        %52 = vector.broadcast %cst_26 : f32 to vector<1x64xf32>
        %53 = arith.mulf %49, %52 : vector<1x64xf32>
        %54 = arith.mulf %51, %51 : vector<1x64xf32>
        %55 = arith.subf %53, %54 : vector<1x64xf32>
        %cst_27 = arith.constant 0.000000e+00 : f32
        %56 = vector.broadcast %cst_27 : f32 to vector<1x64xf32>
        %57 = arith.maximumf %55, %56 : vector<1x64xf32>
        %c2_28 = arith.constant 2 : index
        %c0_29 = arith.constant 0 : index
        %58 = vector.load %arg10[%c2_28, %c0_29] : memref<8x64xf32, #tpu.memory_space<vmem>>, vector<1x64xf32>
        tpu.vector_store %arg10[%c2_28, %c0_29], %51 {strides = array<i32>} : memref<8x64xf32, #tpu.memory_space<vmem>>, vector<1x64xf32>,
        %cst_30 = arith.constant 9.99999974E-6 : f32
        %59 = vector.broadcast %cst_30 : f32 to vector<1x64xf32>
        %60 = arith.addf %57, %59 : vector<1x64xf32>
        %61 = math.rsqrt %60 : vector<1x64xf32>
        %c3_31 = arith.constant 3 : index
        %c0_32 = arith.constant 0 : index
        %62 = vector.load %arg10[%c3_31, %c0_32] : memref<8x64xf32, #tpu.memory_space<vmem>>, vector<1x64xf32>
        tpu.vector_store %arg10[%c3_31, %c0_32], %61 {strides = array<i32>} : memref<8x64xf32, #tpu.memory_space<vmem>>, vector<1x64xf32>,
        %cst_33 = arith.constant 0.000000e+00 : f32
        %63 = vector.broadcast %cst_33 : f32 to vector<2x64xf32>
        %c4_34 = arith.constant 4 : index
        %c0_35 = arith.constant 0 : index
        %64 = vector.load %arg10[%c4_34, %c0_35] : memref<8x64xf32, #tpu.memory_space<vmem>>, vector<2x64xf32>
        tpu.vector_store %arg10[%c4_34, %c0_35], %63 {strides = array<i32>} : memref<8x64xf32, #tpu.memory_space<vmem>>, vector<2x64xf32>,
      } else {
      }
      %c2 = arith.constant 2 : index
      %c0 = arith.constant 0 : index
      %14 = vector.load %arg10[%c2, %c0] : memref<8x64xf32, #tpu.memory_space<vmem>>, vector<1x64xf32>
      %c3 = arith.constant 3 : index
      %c0_5 = arith.constant 0 : index
      %15 = vector.load %arg10[%c3, %c0_5] : memref<8x64xf32, #tpu.memory_space<vmem>>, vector<1x64xf32>
      %16 = arith.index_cast %1 : i32 to index
      %c0_6 = arith.constant 0 : index
      %17 = vector.load %arg8[%16, %c0_6] : memref<512x64xbf16, #tpu.memory_space<vmem>>, vector<128x64xbf16>
      %18 = arith.extf %17 : vector<128x64xbf16> to vector<128x64xf32>
      %19 = vector.broadcast %14 : vector<1x64xf32> to vector<128x64xf32>
      %20 = arith.subf %18, %19 : vector<128x64xf32>
      %21 = vector.broadcast %15 : vector<1x64xf32> to vector<128x64xf32>
      %22 = arith.mulf %20, %21 : vector<128x64xf32>
      %23 = arith.truncf %22 : vector<128x64xf32> to vector<128x64xbf16>
      %c16 = arith.constant 16 : index
      %c0_7 = arith.constant 0 : index
      %24 = vector.load %arg3[%c16, %c0_7] : memref<208x64xbf16, #tpu.memory_space<vmem>>, vector<64x64xbf16>
      %c1 = arith.constant 1 : index
      %c0_8 = arith.constant 0 : index
      %25 = vector.load %arg5[%c1, %c0_8] : memref<8x128xf32, #tpu.memory_space<vmem>>, vector<1x64xf32>
      %cst = arith.constant dense<0.000000e+00> : vector<128x64xf32>
      %26 = tpu.matmul %23, %24, %cst {dimension_numbers = #tpu.dot_dimension_numbers<[1], [0], [0], [1], [0, 0, 1, 1], [], []>} : vector<128x64xbf16>, vector<64x64xbf16>, vector<128x64xf32> -> vector<128x64xf32>
      %27 = vector.broadcast %25 : vector<1x64xf32> to vector<128x64xf32>
      %28 = arith.addf %26, %27 : vector<128x64xf32>
      %cst_9 = arith.constant 0.000000e+00 : f32
      %29 = vector.broadcast %cst_9 : f32 to vector<128x64xf32>
      %30 = arith.maximumf %28, %29 : vector<128x64xf32>
      %c80 = arith.constant 80 : index
      %c0_10 = arith.constant 0 : index
      %31 = vector.load %arg3[%c80, %c0_10] : memref<208x64xbf16, #tpu.memory_space<vmem>>, vector<64x64xbf16>
      %32 = arith.truncf %30 : vector<128x64xf32> to vector<128x64xbf16>
      %cst_11 = arith.constant dense<0.000000e+00> : vector<128x64xf32>
      %33 = tpu.matmul %32, %31, %cst_11 {dimension_numbers = #tpu.dot_dimension_numbers<[1], [0], [0], [1], [0, 0, 1, 1], [], []>} : vector<128x64xbf16>, vector<64x64xbf16>, vector<128x64xf32> -> vector<128x64xf32>
      %34 = arith.truncf %33 : vector<128x64xf32> to vector<128x64xbf16>
      %35 = arith.index_cast %1 : i32 to index
      %c0_12 = arith.constant 0 : index
      %36 = vector.load %arg9[%35, %c0_12] : memref<512x64xbf16, #tpu.memory_space<vmem>>, vector<128x64xbf16>
      tpu.vector_store %arg9[%35, %c0_12], %34 {strides = array<i32>} : memref<512x64xbf16, #tpu.memory_space<vmem>>, vector<128x64xbf16>,
      %c4 = arith.constant 4 : index
      %c0_13 = arith.constant 0 : index
      %37 = vector.load %arg10[%c4, %c0_13] : memref<8x64xf32, #tpu.memory_space<vmem>>, vector<1x64xf32>
      %cst_14 = arith.constant dense<0.000000e+00> : vector<64xf32>
      %38 = vector.multi_reduction <add>, %33, %cst_14 [0] : vector<128x64xf32> to vector<64xf32>
      %39 = vector.shape_cast %38 : vector<64xf32> to vector<1x64xf32>
      %40 = arith.addf %37, %39 : vector<1x64xf32>
      %c4_15 = arith.constant 4 : index
      %c0_16 = arith.constant 0 : index
      %41 = vector.load %arg10[%c4_15, %c0_16] : memref<8x64xf32, #tpu.memory_space<vmem>>, vector<1x64xf32>
      tpu.vector_store %arg10[%c4_15, %c0_16], %40 {strides = array<i32>} : memref<8x64xf32, #tpu.memory_space<vmem>>, vector<1x64xf32>,
      %c5 = arith.constant 5 : index
      %c0_17 = arith.constant 0 : index
      %42 = vector.load %arg10[%c5, %c0_17] : memref<8x64xf32, #tpu.memory_space<vmem>>, vector<1x64xf32>
      %43 = arith.mulf %33, %33 : vector<128x64xf32>
      %cst_18 = arith.constant dense<0.000000e+00> : vector<64xf32>
      %44 = vector.multi_reduction <add>, %43, %cst_18 [0] : vector<128x64xf32> to vector<64xf32>
      %45 = vector.shape_cast %44 : vector<64xf32> to vector<1x64xf32>
      %46 = arith.addf %42, %45 : vector<1x64xf32>
      %c5_19 = arith.constant 5 : index
      %c0_20 = arith.constant 0 : index
      %47 = vector.load %arg10[%c5_19, %c0_20] : memref<8x64xf32, #tpu.memory_space<vmem>>, vector<1x64xf32>
      tpu.vector_store %arg10[%c5_19, %c0_20], %46 {strides = array<i32>} : memref<8x64xf32, #tpu.memory_space<vmem>>, vector<1x64xf32>,
    } else {
    }
    %c2_i32 = arith.constant 2 : i32
    %8 = arith.cmpi eq, %arg0, %c2_i32 : i32
    %9 = arith.extui %8 : i1 to i32
    %c0_i32_2 = arith.constant 0 : i32
    %10 = arith.cmpi ne, %9, %c0_i32_2 : i32
    scf.if %10 {
      %c0_i32_3 = arith.constant 0 : i32
      %11 = arith.cmpi eq, %arg1, %c0_i32_3 : i32
      %12 = arith.extui %11 : i1 to i32
      %c0_i32_4 = arith.constant 0 : i32
      %13 = arith.cmpi ne, %12, %c0_i32_4 : i32
      scf.if %13 {
        %c4 = arith.constant 4 : index
        %c0_16 = arith.constant 0 : index
        %39 = vector.load %arg10[%c4, %c0_16] : memref<8x64xf32, #tpu.memory_space<vmem>>, vector<1x64xf32>
        %c5 = arith.constant 5 : index
        %c0_17 = arith.constant 0 : index
        %40 = vector.load %arg10[%c5, %c0_17] : memref<8x64xf32, #tpu.memory_space<vmem>>, vector<1x64xf32>
        %cst_18 = arith.constant 0.001953125 : f32
        %41 = vector.broadcast %cst_18 : f32 to vector<1x64xf32>
        %42 = arith.mulf %39, %41 : vector<1x64xf32>
        %cst_19 = arith.constant 0.001953125 : f32
        %43 = vector.broadcast %cst_19 : f32 to vector<1x64xf32>
        %44 = arith.mulf %40, %43 : vector<1x64xf32>
        %45 = arith.mulf %42, %42 : vector<1x64xf32>
        %46 = arith.subf %44, %45 : vector<1x64xf32>
        %cst_20 = arith.constant 0.000000e+00 : f32
        %47 = vector.broadcast %cst_20 : f32 to vector<1x64xf32>
        %48 = arith.maximumf %46, %47 : vector<1x64xf32>
        %c6_21 = arith.constant 6 : index
        %c0_22 = arith.constant 0 : index
        %49 = vector.load %arg10[%c6_21, %c0_22] : memref<8x64xf32, #tpu.memory_space<vmem>>, vector<1x64xf32>
        tpu.vector_store %arg10[%c6_21, %c0_22], %42 {strides = array<i32>} : memref<8x64xf32, #tpu.memory_space<vmem>>, vector<1x64xf32>,
        %cst_23 = arith.constant 9.99999974E-6 : f32
        %50 = vector.broadcast %cst_23 : f32 to vector<1x64xf32>
        %51 = arith.addf %48, %50 : vector<1x64xf32>
        %52 = math.rsqrt %51 : vector<1x64xf32>
        %c7_24 = arith.constant 7 : index
        %c0_25 = arith.constant 0 : index
        %53 = vector.load %arg10[%c7_24, %c0_25] : memref<8x64xf32, #tpu.memory_space<vmem>>, vector<1x64xf32>
        tpu.vector_store %arg10[%c7_24, %c0_25], %52 {strides = array<i32>} : memref<8x64xf32, #tpu.memory_space<vmem>>, vector<1x64xf32>,
      } else {
      }
      %c6 = arith.constant 6 : index
      %c0 = arith.constant 0 : index
      %14 = vector.load %arg10[%c6, %c0] : memref<8x64xf32, #tpu.memory_space<vmem>>, vector<1x64xf32>
      %c7 = arith.constant 7 : index
      %c0_5 = arith.constant 0 : index
      %15 = vector.load %arg10[%c7, %c0_5] : memref<8x64xf32, #tpu.memory_space<vmem>>, vector<1x64xf32>
      %16 = arith.index_cast %1 : i32 to index
      %c0_6 = arith.constant 0 : index
      %17 = vector.load %arg9[%16, %c0_6] : memref<512x64xbf16, #tpu.memory_space<vmem>>, vector<128x64xbf16>
      %18 = arith.extf %17 : vector<128x64xbf16> to vector<128x64xf32>
      %19 = vector.broadcast %14 : vector<1x64xf32> to vector<128x64xf32>
      %20 = arith.subf %18, %19 : vector<128x64xf32>
      %21 = vector.broadcast %15 : vector<1x64xf32> to vector<128x64xf32>
      %22 = arith.mulf %20, %21 : vector<128x64xf32>
      %23 = arith.truncf %22 : vector<128x64xf32> to vector<128x64xbf16>
      %c144 = arith.constant 144 : index
      %c0_7 = arith.constant 0 : index
      %24 = vector.load %arg3[%c144, %c0_7] : memref<208x64xbf16, #tpu.memory_space<vmem>>, vector<64x64xbf16>
      %c2 = arith.constant 2 : index
      %c0_8 = arith.constant 0 : index
      %25 = vector.load %arg5[%c2, %c0_8] : memref<8x128xf32, #tpu.memory_space<vmem>>, vector<1x64xf32>
      %cst = arith.constant dense<0.000000e+00> : vector<128x64xf32>
      %26 = tpu.matmul %23, %24, %cst {dimension_numbers = #tpu.dot_dimension_numbers<[1], [0], [0], [1], [0, 0, 1, 1], [], []>} : vector<128x64xbf16>, vector<64x64xbf16>, vector<128x64xf32> -> vector<128x64xf32>
      %27 = vector.broadcast %25 : vector<1x64xf32> to vector<128x64xf32>
      %28 = arith.addf %26, %27 : vector<128x64xf32>
      %cst_9 = arith.constant 0.000000e+00 : f32
      %29 = vector.broadcast %cst_9 : f32 to vector<128x64xf32>
      %30 = arith.maximumf %28, %29 : vector<128x64xf32>
      %c3 = arith.constant 3 : index
      %c0_10 = arith.constant 0 : index
      %31 = vector.load %arg5[%c3, %c0_10] : memref<8x128xf32, #tpu.memory_space<vmem>>, vector<1x128xf32>
      %32 = arith.truncf %30 : vector<128x64xf32> to vector<128x64xbf16>
      %c0_11 = arith.constant 0 : index
      %c0_12 = arith.constant 0 : index
      %33 = vector.load %arg4[%c0_11, %c0_12] : memref<64x128xbf16, #tpu.memory_space<vmem>>, vector<64x128xbf16>
      %cst_13 = arith.constant dense<0.000000e+00> : vector<128x128xf32>
      %34 = tpu.matmul %32, %33, %cst_13 {dimension_numbers = #tpu.dot_dimension_numbers<[1], [0], [0], [1], [0, 0, 1, 1], [], []>} : vector<128x64xbf16>, vector<64x128xbf16>, vector<128x128xf32> -> vector<128x128xf32>
      %35 = vector.broadcast %31 : vector<1x128xf32> to vector<128x128xf32>
      %36 = arith.addf %34, %35 : vector<128x128xf32>
      %37 = arith.truncf %36 : vector<128x128xf32> to vector<128x128xbf16>
      %c0_14 = arith.constant 0 : index
      %c0_15 = arith.constant 0 : index
      %38 = vector.load %arg6[%c0_14, %c0_15] : memref<128x128xbf16, #tpu.memory_space<vmem>>, vector<128x128xbf16>
      tpu.vector_store %arg6[%c0_14, %c0_15], %37 {strides = array<i32>} : memref<128x128xbf16, #tpu.memory_space<vmem>>, vector<128x128xbf16>,
    } else {
    }
    return
  }
  func.func @transform_0(%arg0: i32, %arg1: i32) -> (i32, i32) {
    %c0_i32 = arith.constant 0 : i32
    %0 = arith.cmpi eq, %arg0, %c0_i32 : i32
    %c0_i32_0 = arith.constant 0 : i32
    %1 = arith.select %0, %arg1, %c0_i32_0 : i32
    %c0_i32_1 = arith.constant 0 : i32
    %c0_i32_2 = arith.constant 0 : i32
    return %1, %c0_i32_1 : i32, i32
  }
  func.func @transform_1(%arg0: i32, %arg1: i32) -> (i32, i32) {
    %c0_i32 = arith.constant 0 : i32
    %c0_i32_0 = arith.constant 0 : i32
    %c0_i32_1 = arith.constant 0 : i32
    return %c0_i32, %c0_i32_0 : i32, i32
  }
  func.func @transform_2(%arg0: i32, %arg1: i32) -> (i32, i32) {
    %c0_i32 = arith.constant 0 : i32
    %c0_i32_0 = arith.constant 0 : i32
    %c0_i32_1 = arith.constant 0 : i32
    return %c0_i32, %c0_i32_0 : i32, i32
  }
  func.func @transform_3(%arg0: i32, %arg1: i32) -> (i32, i32) {
    %c0_i32 = arith.constant 0 : i32
    %c0_i32_0 = arith.constant 0 : i32
    %c0_i32_1 = arith.constant 0 : i32
    return %c0_i32, %c0_i32_0 : i32, i32
  }
  func.func @transform_4(%arg0: i32, %arg1: i32) -> (i32, i32) {
    %c2_i32 = arith.constant 2 : i32
    %0 = arith.cmpi eq, %arg0, %c2_i32 : i32
    %c0_i32 = arith.constant 0 : i32
    %1 = arith.select %0, %arg1, %c0_i32 : i32
    %c0_i32_0 = arith.constant 0 : i32
    %c0_i32_1 = arith.constant 0 : i32
    return %1, %c0_i32_0 : i32, i32
  }
}

</mosaic_0001>

<llo_original>
// kernel: tpu_custom_call.1
$region0: #{tpu_custom_call.1}
  #allocation0 [shape = 'u32[]', space=smem, size = 0x4, offset = 0x4, fixed_abs, tag = 'smem constant byte address 0x4 - core index']
  #allocation1 [shape = 'u32[144,128]{1,0:T(1,128)}', space=vmem, size = 0x12000, scoped, tag = 'internal scratch']
  #allocation2 [shape = 'bf16[128,16]{1,0:T(16,128)(2,1)}', space=vmem, size = 0x8000, scoped, tag = 'scratch operand']
  #allocation3 [shape = 'bf16[512,64]{1,0:T(16,128)(2,1)}', space=vmem, size = 0x20000, scoped, tag = 'scratch operand']
  #allocation4 [shape = 'bf16[512,64]{1,0:T(16,128)(2,1)}', space=vmem, size = 0x20000, scoped, tag = 'scratch operand']
  #allocation5 [shape = 'f32[8,64]{1,0:T(8,128)}', space=vmem, size = 0x1000, scoped, tag = 'scratch operand']
  %s0 = inlined_call_operand.vmem [shape: bf16[512,10], index: 0, kind: input, shape index: {}]
  %s1 = inlined_call_operand.vmem [shape: bf16[208,64], index: 1, kind: input, shape index: {}]
  %s2 = inlined_call_operand.vmem [shape: bf16[64,128], index: 2, kind: input, shape index: {}]
  %s3 = inlined_call_operand.vmem [shape: f32[8,128], index: 3, kind: input, shape index: {}]
  %s4 = inlined_call_operand.hbm [shape: bf16[512,128], index: 4, kind: output, shape index: {}]
  %s5 = sld [smem:[#allocation0]]
  $region73: #{tpu_custom_call.1} parent=0
    _
  %s7 = ssub.s32 1, %s5
  %s8 = scalar_select 0, %s7, %s5
  $region1: #{tpu_custom_call.1} parent=0
    #allocation6 [shape = 'u8[65536]{0}', space=vmem, size = 0x10000, scoped, tag = 'output window, operand 0']
    #allocation7 [shape = 's32[2]{0}', space=sflag, size = 0x8, scoped, tag = 'scoped memory for tpu_custom_call.1']
    %9 = vsyncpa [#allocation7], 0
    %s10 = scalar_lea.sflag [#allocation7], 1
    %11 = vsyncpa %s10, 0
    loop: start=0, step=1, limit=14
    $region2: #{tpu_custom_call.1} parent=1 // loop_pre_header
      _
    $region3: #{tpu_custom_call.1} parent=1 // loop_header
      %s13 = sphi 0, %s17
      %p14 = scmp.ge.s32.totalorder %s13, 14
      %s20 = sphi 0, %s32
      %s21 = sphi 0, %s28
      %s22 = sphi 0, %s20
      %s23 = sphi 0, %s21
      %s24 = sphi 0, %s22
      %s25 = sphi 0, %s23
      %s39 = sphi 0, %s41
      %s42 = sphi 0, %s39
      %s43 = sphi 0, %s42
      %s59 = sphi 0, %s43
      %s63 = sphi 0, %s63
      %s65 = sphi 0, %s63
      %s66 = sphi 0, %s65
      %s80 = sphi 0, %s66
      %s84 = sphi 0, %s84
      %s86 = sphi 0, %s84
      %s87 = sphi 0, %s86
      %s101 = sphi 0, %s87
      %s105 = sphi 0, %s105
      %s107 = sphi 0, %s105
      %s108 = sphi 0, %s107
      %s122 = sphi 0, %s108
      %s132 = sphi 0, %s134
      %s135 = sphi 0, %s132
      %s136 = sphi 0, %s135
      %s152 = sphi 0, %s136
    $region4: #{tpu_custom_call.1} parent=1 // loop_header_branch
      %16 = sbr.rel (%p14) target = $region8
    $region5: #{tpu_custom_call.1} parent=1 // loop_body
      %s18 = ssub.s32 %s13, 1
      %s19 = ssub.s32 %s13, 2
      %s26 = sadd.s32 1, %s21
      %p27 = scmp.ge.s32.totalorder %s26, 4
      %s28 = scalar_select %p27, 0, %s26
      %s29 = sadd.s32 1, %s20
      %s30 = scalar_select %p27, %s29, %s20
      %p31 = scmp.ge.s32.totalorder %s30, 3
      %s32 = scalar_select %p31, 0, %s30
      %p33 = scmp.eq.s32.totalorder %s20, 0
      %s34 = scalar_select %p33, %s21, 0
      %p35 = scmp.eq.s32.totalorder %s32, 0
      %s36 = scalar_select %p35, %s28, 0
      %s37 = ssub.s32 %s34, %s36
      %p38 = scmp.eq.s32.totalorder %s37, 0
      %s40 = sadd.s32 %s39, 1
      %s41 = scalar_select %p38, %s39, %s40
      %p44 = pneg %p38
      %p45 = scmp.eq.s32.totalorder %s13, 11
      %p46 = por %p44, %p45
      %p47 = scmp.ne.s32.totalorder %s39, %s42
      %p48 = scmp.eq.s32.totalorder %s13, 0
      %p49 = por %p47, %p48
      %p50 = scmp.ne.s32.totalorder %s39, %s42
      %p51 = scmp.eq.s32.totalorder %s18, 11
      %p52 = por %p50, %p51
      %p53 = scmp.ne.s32.totalorder %s42, %s43
      %p54 = scmp.eq.s32.totalorder %s18, 0
      %p55 = por %p53, %p54
      %p56 = scmp.ne.s32.totalorder %s42, %s43
      %p57 = scmp.eq.s32.totalorder %s19, 11
      %p58 = por %p56, %p57
      %p60 = scmp.ne.s32.totalorder %s43, %s59
      %p61 = scmp.eq.s32.totalorder %s19, 0
      %p62 = por %p60, %p61
      %s64 = sadd.s32 %s63, 1
      %p67 = scmp.eq.s32.totalorder %s13, 11
      %p68 = scmp.ne.s32.totalorder %s63, %s65
      %p69 = scmp.eq.s32.totalorder %s13, 0
      %p70 = por %p68, %p69
      %p71 = scmp.ne.s32.totalorder %s63, %s65
      %p72 = scmp.eq.s32.totalorder %s18, 11
      %p73 = por %p71, %p72
      %p74 = scmp.ne.s32.totalorder %s65, %s66
      %p75 = scmp.eq.s32.totalorder %s18, 0
      %p76 = por %p74, %p75
      %p77 = scmp.ne.s32.totalorder %s65, %s66
      %p78 = scmp.eq.s32.totalorder %s19, 11
      %p79 = por %p77, %p78
      %p81 = scmp.ne.s32.totalorder %s66, %s80
      %p82 = scmp.eq.s32.totalorder %s19, 0
      %p83 = por %p81, %p82
      %s85 = sadd.s32 %s84, 1
      %p88 = scmp.eq.s32.totalorder %s13, 11
      %p89 = scmp.ne.s32.totalorder %s84, %s86
      %p90 = scmp.eq.s32.totalorder %s13, 0
      %p91 = por %p89, %p90
      %p92 = scmp.ne.s32.totalorder %s84, %s86
      %p93 = scmp.eq.s32.totalorder %s18, 11
      %p94 = por %p92, %p93
      %p95 = scmp.ne.s32.totalorder %s86, %s87
      %p96 = scmp.eq.s32.totalorder %s18, 0
      %p97 = por %p95, %p96
      %p98 = scmp.ne.s32.totalorder %s86, %s87
      %p99 = scmp.eq.s32.totalorder %s19, 11
      %p100 = por %p98, %p99
      %p102 = scmp.ne.s32.totalorder %s87, %s101
      %p103 = scmp.eq.s32.totalorder %s19, 0
      %p104 = por %p102, %p103
      %s106 = sadd.s32 %s105, 1
      %p109 = scmp.eq.s32.totalorder %s13, 11
      %p110 = scmp.ne.s32.totalorder %s105, %s107
      %p111 = scmp.eq.s32.totalorder %s13, 0
      %p112 = por %p110, %p111
      %p113 = scmp.ne.s32.totalorder %s105, %s107
      %p114 = scmp.eq.s32.totalorder %s18, 11
      %p115 = por %p113, %p114
      %p116 = scmp.ne.s32.totalorder %s107, %s108
      %p117 = scmp.eq.s32.totalorder %s18, 0
      %p118 = por %p116, %p117
      %p119 = scmp.ne.s32.totalorder %s107, %s108
      %p120 = scmp.eq.s32.totalorder %s19, 11
      %p121 = por %p119, %p120
      %p123 = scmp.ne.s32.totalorder %s108, %s122
      %p124 = scmp.eq.s32.totalorder %s19, 0
      %p125 = por %p123, %p124
      %p126 = scmp.eq.s32.totalorder %s20, 2
      %s127 = scalar_select %p126, %s21, 0
      %p128 = scmp.eq.s32.totalorder %s32, 2
      %s129 = scalar_select %p128, %s28, 0
      %s130 = ssub.s32 %s127, %s129
      %p131 = scmp.eq.s32.totalorder %s130, 0
      %s133 = sadd.s32 %s132, 1
      %s134 = scalar_select %p131, %s132, %s133
      %p137 = pneg %p131
      %p138 = scmp.eq.s32.totalorder %s13, 11
      %p139 = por %p137, %p138
      %p140 = scmp.ne.s32.totalorder %s132, %s135
      %p141 = scmp.eq.s32.totalorder %s13, 0
      %p142 = por %p140, %p141
      %p143 = scmp.ne.s32.totalorder %s132, %s135
      %p144 = scmp.eq.s32.totalorder %s18, 11
      %p145 = por %p143, %p144
      %p146 = scmp.ne.s32.totalorder %s135, %s136
      %p147 = scmp.eq.s32.totalorder %s18, 0
      %p148 = por %p146, %p147
      %p149 = scmp.ne.s32.totalorder %s135, %s136
      %p150 = scmp.eq.s32.totalorder %s19, 11
      %p151 = por %p149, %p150
      %p153 = scmp.ne.s32.totalorder %s136, %s152
      %p154 = scmp.eq.s32.totalorder %s19, 0
      %p155 = por %p153, %p154
      %p156 = scmp.le.s32.totalorder 1, %s13
      %p157 = scmp.lt.s32.totalorder %s13, 13
      %p158 = pnand %p156, %p157
      %p159 = pneg %p158
      // Predicated region
      $region9: #{tpu_custom_call.1} parent=5 // pred_check
        _
      $region10: #{tpu_custom_call.1} parent=5 // pred_check_branch
        %161 = sbr.rel (%p158) target = $region12
      $region11: #{tpu_custom_call.1} parent=5 // pred_region
        %s162 = ssub.s32 %s13, 1
        // Predicated region
        $region13: #{tpu_custom_call.1} parent=11 // pred_check
          %p163 = pneg %p76
        $region14: #{tpu_custom_call.1} parent=11 // pred_check_branch
          %165 = sbr.rel (%p163) target = $region16
        $region15: #{tpu_custom_call.1} parent=11 // pred_region
          _
        $region16: #{tpu_custom_call.1} parent=11 // pred_fallthru
          _
        // Predicated region
        $region17: #{tpu_custom_call.1} parent=11 // pred_check
          %p166 = pneg %p97
        $region18: #{tpu_custom_call.1} parent=11 // pred_check_branch
          %168 = sbr.rel (%p166) target = $region20
        $region19: #{tpu_custom_call.1} parent=11 // pred_region
          _
        $region20: #{tpu_custom_call.1} parent=11 // pred_fallthru
          _
        // Predicated region
        $region21: #{tpu_custom_call.1} parent=11 // pred_check
          %p169 = pneg %p118
        $region22: #{tpu_custom_call.1} parent=11 // pred_check_branch
          %171 = sbr.rel (%p169) target = $region24
        $region23: #{tpu_custom_call.1} parent=11 // pred_region
          _
        $region24: #{tpu_custom_call.1} parent=11 // pred_fallthru
          _
      $region12: #{tpu_custom_call.1} parent=5 // pred_fallthru
        _
      %p172 = scmp.lt.s32.totalorder %s13, 12
      // Predicated region
      $region25: #{tpu_custom_call.1} parent=5 // pred_check
        %p173 = pneg %p172
      $region26: #{tpu_custom_call.1} parent=5 // pred_check_branch
        %175 = sbr.rel (%p173) target = $region28
      $region27: #{tpu_custom_call.1} parent=5 // pred_region
        // Predicated region
        $region29: #{tpu_custom_call.1} parent=27 // pred_check
          %p176 = pneg %p49
        $region30: #{tpu_custom_call.1} parent=27 // pred_check_branch
          %178 = sbr.rel (%p176) target = $region32
        $region31: #{tpu_custom_call.1} parent=27 // pred_region
          %p179 = scmp.eq.s32.totalorder %s20, 0
          %s180 = scalar_select %p179, %s21, 0
          %s181 = smul.u32 16, %s180
          %p182 = scmp.lt.s32.totalorder %s181, 63
          %s183 = scalar_select %p182, %s181, 63
          %s184 = smul.addr %s183, 4
          %s185 = scalar_lea.vmem %s0, %s184
          %p186 = scmp.eq.s32.totalorder %s20, 0
          %s187 = scalar_select %p186, %s21, 0
          %s188 = smul.u32 16, %s187
        $region32: #{tpu_custom_call.1} parent=27 // pred_fallthru
          _
      $region28: #{tpu_custom_call.1} parent=5 // pred_fallthru
        _
      %p189 = scmp.le.s32.totalorder 1, %s13
      %p190 = scmp.lt.s32.totalorder %s13, 13
      %p191 = pnand %p189, %p190
      %p192 = pneg %p191
      // Predicated region
      $region33: #{tpu_custom_call.1} parent=5 // pred_check
        _
      $region34: #{tpu_custom_call.1} parent=5 // pred_check_branch
        %194 = sbr.rel (%p191) target = $region36
      $region35: #{tpu_custom_call.1} parent=5 // pred_region
        %s195 = ssub.s32 %s13, 1
        %p196 = scmp.eq.s32.totalorder %s22, 0
        %s197 = scalar_select %p196, %s23, 0
        %s198 = smul.u32 16, %s197
        %p199 = scmp.lt.s32.totalorder %s198, 63
        %s200 = scalar_select %p199, %s198, 63
        %s201 = smul.addr %s200, 4
        %s202 = scalar_lea.vmem %s0, %s201
        %p203 = pneg %p55
        %p204 = pneg %p52
        %p205 = pneg %p76
        %p206 = pneg %p73
        %p207 = pneg %p97
        %p208 = pneg %p94
        %p209 = pneg %p118
        %p210 = pneg %p115
        %p211 = pneg %p148
        %p212 = pneg %p145
        %s213 = sand.u32 %s135, 1
        %s214 = scalar_lea.sflag [#allocation7], %s213
        %s215 = sand.u32 %s135, 1
        %s216 = smul.addr %s215, 64
        %s217 = scalar_lea.vmem [#allocation6], %s216
        %p218 = scmp.eq.s32.totalorder %s22, 0
        %s219 = scalar_select %p218, %s23, 0
        %s220 = smul.u32 16, %s219
        %p221 = scmp.lt.s32.totalorder %s220, 63
        %s222 = scalar_select %p221, %s220, 63
        %s223 = smul.addr %s222, 4
        %s224 = scalar_lea.vmem %s0, %s223
        %p225 = scmp.eq.s32.totalorder %s22, 0
        %s226 = scalar_select %p225, %s23, 0
        %s227 = smul.u32 16, %s226
        %p228 = scmp.eq.s32.totalorder %s22, 2
        %s229 = scalar_select %p228, %s23, 0
        %s230 = smul.u32 16, %s229
        %s232 = smul.u32 %s23, 128
        %p233 = scmp.eq.s32.totalorder %s22, 0
        // Predicated region
        $region37: #{tpu_custom_call.1} parent=35 // pred_check
          %p234 = pneg %p233
        $region38: #{tpu_custom_call.1} parent=35 // pred_check_branch
          %236 = sbr.rel (%p234) target = $region40
        $region39: #{tpu_custom_call.1} parent=35 // pred_region
          %p237 = scmp.eq.s32.totalorder %s23, 0
          // Predicated region
          $region41: #{tpu_custom_call.1} parent=39 // pred_check
            %p238 = pneg %p237
          $region42: #{tpu_custom_call.1} parent=39 // pred_check_branch
            %240 = sbr.rel (%p238) target = $region44
          $region43: #{tpu_custom_call.1} parent=39 // pred_region
            %vm241 = vcmask 523264
            %242 = vst.msk [vmem:[#allocation5] sm:$0xff] %vm241, 0.0
          $region44: #{tpu_custom_call.1} parent=39 // pred_fallthru
            _
          %v243 = vld [vmem:[%s224] sm:$0xf]
          %v244 = vld [vmem:[%s224 + $0x4] sm:$0xf]
          %v245 = vld [vmem:[%s224 + $0x8] sm:$0xf]
          %v246 = vld [vmem:[%s224 + $0xc] sm:$0xf]
          %v247 = vld [vmem:[%s224 + $0x10] sm:$0xf]
          %v248 = vld [vmem:[%s224 + $0x14] sm:$0xf]
          %v249 = vld [vmem:[%s224 + $0x18] sm:$0xf]
          %v250 = vld [vmem:[%s224 + $0x1c] sm:$0xf]
          %v251 = vld [vmem:[%s224 + $0x20] sm:$0xf]
          %v252 = vld [vmem:[%s224 + $0x24] sm:$0xf]
          %v253 = vld [vmem:[%s224 + $0x28] sm:$0xf]
          %v254 = vld [vmem:[%s224 + $0x2c] sm:$0xf]
          %v255 = vld [vmem:[%s224 + $0x30] sm:$0xf]
          %v256 = vld [vmem:[%s224 + $0x34] sm:$0xf]
          %v257 = vld [vmem:[%s224 + $0x38] sm:$0xf]
          %v258 = vld [vmem:[%s224 + $0x3c] sm:$0xf]
          %v275 = vunpack.c.l.b16 %v243
          %v276 = vunpack.c.l.b16 %v244
          %v277 = vunpack.c.l.b16 %v245
          %v278 = vunpack.c.l.b16 %v246
          %v279 = vunpack.c.l.b16 %v247
          %v280 = vunpack.c.l.b16 %v248
          %v281 = vunpack.c.l.b16 %v249
          %v282 = vunpack.c.l.b16 %v250
          %v283 = vunpack.c.l.b16 %v251
          %v284 = vunpack.c.l.b16 %v252
          %v285 = vunpack.c.l.b16 %v253
          %v286 = vunpack.c.l.b16 %v254
          %v287 = vunpack.c.l.b16 %v255
          %v288 = vunpack.c.l.b16 %v256
          %v289 = vunpack.c.l.b16 %v257
          %v290 = vunpack.c.l.b16 %v258
          %v291 = vpack.c.b16 %v276, %v275
          %v292 = vpack.c.b16 %v278, %v277
          %v293 = vpack.c.b16 %v280, %v279
          %v294 = vpack.c.b16 %v282, %v281
          %v295 = vpack.c.b16 %v284, %v283
          %v296 = vpack.c.b16 %v286, %v285
          %v297 = vpack.c.b16 %v288, %v287
          %v298 = vpack.c.b16 %v290, %v289
          %vm307 = vcmask 80896
          %308 = vst.msk [vmem:[#allocation2] sm:$0xff] %vm307, %v291
          %309 = vst.msk [vmem:[#allocation2 + $0x8] sm:$0xff] %vm307, %v292
          %310 = vst.msk [vmem:[#allocation2 + $0x10] sm:$0xff] %vm307, %v293
          %311 = vst.msk [vmem:[#allocation2 + $0x18] sm:$0xff] %vm307, %v294
          %312 = vst.msk [vmem:[#allocation2 + $0x20] sm:$0xff] %vm307, %v295
          %313 = vst.msk [vmem:[#allocation2 + $0x28] sm:$0xff] %vm307, %v296
          %314 = vst.msk [vmem:[#allocation2 + $0x30] sm:$0xff] %vm307, %v297
          %315 = vst.msk [vmem:[#allocation2 + $0x38] sm:$0xff] %vm307, %v298
          %vm316 = vcmask 130128
          %317 = vst.msk [vmem:[#allocation2] sm:$0xff] %vm316, 0
          %318 = vst.msk [vmem:[#allocation2 + $0x8] sm:$0xff] %vm316, 0
          %319 = vst.msk [vmem:[#allocation2 + $0x10] sm:$0xff] %vm316, 0
          %320 = vst.msk [vmem:[#allocation2 + $0x18] sm:$0xff] %vm316, 0
          %321 = vst.msk [vmem:[#allocation2 + $0x20] sm:$0xff] %vm316, 0
          %322 = vst.msk [vmem:[#allocation2 + $0x28] sm:$0xff] %vm316, 0
          %323 = vst.msk [vmem:[#allocation2 + $0x30] sm:$0xff] %vm316, 0
          %324 = vst.msk [vmem:[#allocation2 + $0x38] sm:$0xff] %vm316, 0
          %v325 = vld [vmem:[#allocation2] sm:$0xff]
          %v326 = vld [vmem:[#allocation2 + $0x8] sm:$0xff]
          %v327 = vld [vmem:[#allocation2 + $0x10] sm:$0xff]
          %v328 = vld [vmem:[#allocation2 + $0x18] sm:$0xff]
          %v329 = vld [vmem:[#allocation2 + $0x20] sm:$0xff]
          %v330 = vld [vmem:[#allocation2 + $0x28] sm:$0xff]
          %v331 = vld [vmem:[#allocation2 + $0x30] sm:$0xff]
          %v332 = vld [vmem:[#allocation2 + $0x38] sm:$0xff]
          %v333 = vld [vmem:[%s1] sm:$0xf]
          %v334 = vld [vmem:[%s1 + $0x4] sm:$0xf]
          %v335 = vld [vmem:[%s3] sm:$0x1]
          %v336 = vlaneseq
          %v337 = vshrl.u32 %v336, 7
          %v338 = vsub.s32 0, %v337
          %v339 = vrot.slane %v335, %v338
          %v342 = vunpack.c.l.b16 %v333
          %v343 = vunpack.c.l.b16 %v334
          %v344 = vpack.c.b16 %v343, %v342
          %vm346 = vcmask 130048
          %v348 = vsel %vm346, %v325, 0
          %v351 = vsel %vm346, %v326, 0
          %v354 = vsel %vm346, %v327, 0
          %v357 = vsel %vm346, %v328, 0
          %v360 = vsel %vm346, %v329, 0
          %v363 = vsel %vm346, %v330, 0
          %v366 = vsel %vm346, %v331, 0
          %v369 = vsel %vm346, %v332, 0
          %371 = vmatprep.subr.bf16.mxu0 0
          %372 = vmatpush1.bf16.msra.mxu0 %v344
          %373 = vmatprep.subr.bf16.mxu0 0
          %374 = vmatpush1.bf16.msra.mxu0 0
          %375 = vmatprep.subr.bf16.mxu0 0
          %376 = vmatpush1.bf16.msra.mxu0 0
          %377 = vmatprep.subr.bf16.mxu0 0
          %378 = vmatpush1.bf16.msra.mxu0 0
          %379 = vmatprep.subr.bf16.mxu0 0
          %380 = vmatpush1.bf16.msra.mxu0 0
          %381 = vmatprep.subr.bf16.mxu0 0
          %382 = vmatpush1.bf16.msra.mxu0 0
          %383 = vmatprep.subr.bf16.mxu0 0
          %384 = vmatpush1.bf16.msra.mxu0 0
          %385 = vmatprep.subr.bf16.mxu0 0
          %386 = vmatpush1.bf16.msra.mxu0 0
          %387 = vmatprep.subr.bf16.mxu0 0
          %388 = vmatpush1.bf16.msra.mxu0 0
          %389 = vmatprep.subr.bf16.mxu0 0
          %390 = vmatpush1.bf16.msra.mxu0 0
          %391 = vmatprep.subr.bf16.mxu0 0
          %392 = vmatpush1.bf16.msra.mxu0 0
          %393 = vmatprep.subr.bf16.mxu0 0
          %394 = vmatpush1.bf16.msra.mxu0 0
          %395 = vmatprep.subr.bf16.mxu0 0
          %396 = vmatpush1.bf16.msra.mxu0 0
          %397 = vmatprep.subr.bf16.mxu0 0
          %398 = vmatpush1.bf16.msra.mxu0 0
          %399 = vmatprep.subr.bf16.mxu0 0
          %400 = vmatpush1.bf16.msra.mxu0 0
          %401 = vmatprep.subr.bf16.mxu0 0
          %402 = vmatpush1.bf16.msra.mxu0 0
          %403 = vmatprep.mubr.bf16.mxu0 0
          %404 = vmatmul.mubr.bf16.gmra.mrb[0].mxu0 %v348
          %v405 = vpop.f32.mrb[0].mxu0
          %v406 = vadd.f32 %v339, %v405
          %v407 = vpop.f32.mrb[0].mxu0
          %v408 = vpop.f32.mrb[0].mxu0
          %v409 = vadd.f32 %v339, %v408
          %v410 = vpop.f32.mrb[0].mxu0
          %411 = vmatprep.mubr.bf16.mxu0 0
          %412 = vmatmul.mubr.bf16.gmra.mrb[0].mxu0 %v351
          %v413 = vpop.f32.mrb[0].mxu0
          %v414 = vadd.f32 %v339, %v413
          %v415 = vpop.f32.mrb[0].mxu0
          %v416 = vpop.f32.mrb[0].mxu0
          %v417 = vadd.f32 %v339, %v416
          %v418 = vpop.f32.mrb[0].mxu0
          %419 = vmatprep.mubr.bf16.mxu0 0
          %420 = vmatmul.mubr.bf16.gmra.mrb[0].mxu0 %v354
          %v421 = vpop.f32.mrb[0].mxu0
          %v422 = vadd.f32 %v339, %v421
          %v423 = vpop.f32.mrb[0].mxu0
          %v424 = vpop.f32.mrb[0].mxu0
          %v425 = vadd.f32 %v339, %v424
          %v426 = vpop.f32.mrb[0].mxu0
          %427 = vmatprep.mubr.bf16.mxu0 0
          %428 = vmatmul.mubr.bf16.gmra.mrb[0].mxu0 %v357
          %v429 = vpop.f32.mrb[0].mxu0
          %v430 = vadd.f32 %v339, %v429
          %v431 = vpop.f32.mrb[0].mxu0
          %v432 = vpop.f32.mrb[0].mxu0
          %v433 = vadd.f32 %v339, %v432
          %v434 = vpop.f32.mrb[0].mxu0
          %435 = vmatprep.mubr.bf16.mxu0 0
          %436 = vmatmul.mubr.bf16.gmra.mrb[0].mxu0 %v360
          %v437 = vpop.f32.mrb[0].mxu0
          %v438 = vadd.f32 %v339, %v437
          %v439 = vpop.f32.mrb[0].mxu0
          %v440 = vpop.f32.mrb[0].mxu0
          %v441 = vadd.f32 %v339, %v440
          %v442 = vpop.f32.mrb[0].mxu0
          %443 = vmatprep.mubr.bf16.mxu0 0
          %444 = vmatmul.mubr.bf16.gmra.mrb[0].mxu0 %v363
          %v445 = vpop.f32.mrb[0].mxu0
          %v446 = vadd.f32 %v339, %v445
          %v447 = vpop.f32.mrb[0].mxu0
          %v448 = vpop.f32.mrb[0].mxu0
          %v449 = vadd.f32 %v339, %v448
          %v450 = vpop.f32.mrb[0].mxu0
          %451 = vmatprep.mubr.bf16.mxu0 0
          %452 = vmatmul.mubr.bf16.gmra.mrb[0].mxu0 %v366
          %v453 = vpop.f32.mrb[0].mxu0
          %v454 = vadd.f32 %v339, %v453
          %v455 = vpop.f32.mrb[0].mxu0
          %v456 = vpop.f32.mrb[0].mxu0
          %v457 = vadd.f32 %v339, %v456
          %v458 = vpop.f32.mrb[0].mxu0
          %459 = vmatprep.mubr.bf16.mxu0 0
          %460 = vmatmul.mubr.bf16.gmra.mrb[0].mxu0 %v369
          %v461 = vpop.f32.mrb[0].mxu0
          %v462 = vadd.f32 %v339, %v461
          %v463 = vpop.f32.mrb[0].mxu0
          %v464 = vpop.f32.mrb[0].mxu0
          %v465 = vadd.f32 %v339, %v464
          %v466 = vpop.f32.mrb[0].mxu0
          %467 = vdwg.mxu0
          %v468 = vmax.f32 %v406, 0.0
          %v469 = vmax.f32 %v409, 0.0
          %v470 = vmax.f32 %v414, 0.0
          %v471 = vmax.f32 %v417, 0.0
          %v472 = vmax.f32 %v422, 0.0
          %v473 = vmax.f32 %v425, 0.0
          %v474 = vmax.f32 %v430, 0.0
          %v475 = vmax.f32 %v433, 0.0
          %v476 = vmax.f32 %v438, 0.0
          %v477 = vmax.f32 %v441, 0.0
          %v478 = vmax.f32 %v446, 0.0
          %v479 = vmax.f32 %v449, 0.0
          %v480 = vmax.f32 %v454, 0.0
          %v481 = vmax.f32 %v457, 0.0
          %v482 = vmax.f32 %v462, 0.0
          %v483 = vmax.f32 %v465, 0.0
          %v484 = vpack.c.bf16 %v469, %v468
          %v485 = vpack.c.bf16 %v471, %v470
          %v486 = vpack.c.bf16 %v473, %v472
          %v487 = vpack.c.bf16 %v475, %v474
          %v488 = vpack.c.bf16 %v477, %v476
          %v489 = vpack.c.bf16 %v479, %v478
          %v490 = vpack.c.bf16 %v481, %v480
          %v491 = vpack.c.bf16 %v483, %v482
          %s492 = sshra.s32 %s232, 4
          %s493 = sand.u32 %s232, 15
          %s494 = smul.addr %s492, 8
          %s495 = scalar_lea.vmem [#allocation3], %s494
          %vm496 = vcmask 523264
          %497 = vst.msk [vmem:[%s495] sm:$0xff] %vm496, %v484
          %498 = vst.msk [vmem:[%s495 + $0x8] sm:$0xff] %vm496, %v485
          %499 = vst.msk [vmem:[%s495 + $0x10] sm:$0xff] %vm496, %v486
          %500 = vst.msk [vmem:[%s495 + $0x18] sm:$0xff] %vm496, %v487
          %501 = vst.msk [vmem:[%s495 + $0x20] sm:$0xff] %vm496, %v488
          %502 = vst.msk [vmem:[%s495 + $0x28] sm:$0xff] %vm496, %v489
          %503 = vst.msk [vmem:[%s495 + $0x30] sm:$0xff] %vm496, %v490
          %504 = vst.msk [vmem:[%s495 + $0x38] sm:$0xff] %vm496, %v491
          %v505 = vld [vmem:[#allocation5] sm:$0x1]
          %v506 = vsel %vm496, %v468, 0.0
          %v507 = vsel %vm496, %v469, 0.0
          %v508 = vadd.f32 %v506, %v507
          %v509 = vsel %vm496, %v470, 0.0
          %v510 = vadd.f32 %v508, %v509
          %v511 = vsel %vm496, %v471, 0.0
          %v512 = vadd.f32 %v510, %v511
          %v513 = vsel %vm496, %v472, 0.0
          %v514 = vadd.f32 %v512, %v513
          %v515 = vsel %vm496, %v473, 0.0
          %v516 = vadd.f32 %v514, %v515
          %v517 = vsel %vm496, %v474, 0.0
          %v518 = vadd.f32 %v516, %v517
          %v519 = vsel %vm496, %v475, 0.0
          %v520 = vadd.f32 %v518, %v519
          %v521 = vsel %vm496, %v476, 0.0
          %v522 = vadd.f32 %v520, %v521
          %v523 = vsel %vm496, %v477, 0.0
          %v524 = vadd.f32 %v522, %v523
          %v525 = vsel %vm496, %v478, 0.0
          %v526 = vadd.f32 %v524, %v525
          %v527 = vsel %vm496, %v479, 0.0
          %v528 = vadd.f32 %v526, %v527
          %v529 = vsel %vm496, %v480, 0.0
          %v530 = vadd.f32 %v528, %v529
          %v531 = vsel %vm496, %v481, 0.0
          %v532 = vadd.f32 %v530, %v531
          %v533 = vsel %vm496, %v482, 0.0
          %v534 = vadd.f32 %v532, %v533
          %v535 = vsel %vm496, %v483, 0.0
          %v536 = vadd.f32 %v534, %v535
          %v537 = vrot.slane %v536, 4
          %v538 = vadd.f32 %v536, %v537
          %v539 = vrot.slane %v538, 2
          %v540 = vadd.f32 %v538, %v539
          %v541 = vrot.slane %v540, 1
          %v542 = vadd.f32 %v540, %v541
          %v543 = vadd.f32 %v505, %v542
          %vm544 = vcmask 516096
          %545 = vst.msk [vmem:[#allocation5] sm:$0x1] %vm544, %v543
          %v546 = vld [vmem:[#allocation5 + $0x1] sm:$0x1]
          %v547 = vmul.f32 %v468, %v468
          %v548 = vmul.f32 %v469, %v469
          %v549 = vmul.f32 %v470, %v470
          %v550 = vmul.f32 %v471, %v471
          %v551 = vmul.f32 %v472, %v472
          %v552 = vmul.f32 %v473, %v473
          %v553 = vmul.f32 %v474, %v474
          %v554 = vmul.f32 %v475, %v475
          %v555 = vmul.f32 %v476, %v476
          %v556 = vmul.f32 %v477, %v477
          %v557 = vmul.f32 %v478, %v478
          %v558 = vmul.f32 %v479, %v479
          %v559 = vmul.f32 %v480, %v480
          %v560 = vmul.f32 %v481, %v481
          %v561 = vmul.f32 %v482, %v482
          %v562 = vmul.f32 %v483, %v483
          %v563 = vsel %vm496, %v547, 0.0
          %v564 = vsel %vm496, %v548, 0.0
          %v565 = vadd.f32 %v563, %v564
          %v566 = vsel %vm496, %v549, 0.0
          %v567 = vadd.f32 %v565, %v566
          %v568 = vsel %vm496, %v550, 0.0
          %v569 = vadd.f32 %v567, %v568
          %v570 = vsel %vm496, %v551, 0.0
          %v571 = vadd.f32 %v569, %v570
          %v572 = vsel %vm496, %v552, 0.0
          %v573 = vadd.f32 %v571, %v572
          %v574 = vsel %vm496, %v553, 0.0
          %v575 = vadd.f32 %v573, %v574
          %v576 = vsel %vm496, %v554, 0.0
          %v577 = vadd.f32 %v575, %v576
          %v578 = vsel %vm496, %v555, 0.0
          %v579 = vadd.f32 %v577, %v578
          %v580 = vsel %vm496, %v556, 0.0
          %v581 = vadd.f32 %v579, %v580
          %v582 = vsel %vm496, %v557, 0.0
          %v583 = vadd.f32 %v581, %v582
          %v584 = vsel %vm496, %v558, 0.0
          %v585 = vadd.f32 %v583, %v584
          %v586 = vsel %vm496, %v559, 0.0
          %v587 = vadd.f32 %v585, %v586
          %v588 = vsel %vm496, %v560, 0.0
          %v589 = vadd.f32 %v587, %v588
          %v590 = vsel %vm496, %v561, 0.0
          %v591 = vadd.f32 %v589, %v590
          %v592 = vsel %vm496, %v562, 0.0
          %v593 = vadd.f32 %v591, %v592
          %v594 = vrot.slane %v593, 4
          %v595 = vadd.f32 %v593, %v594
          %v596 = vrot.slane %v595, 2
          %v597 = vadd.f32 %v595, %v596
          %v598 = vrot.slane %v597, 1
          %v599 = vadd.f32 %v597, %v598
          %v600 = vadd.f32 %v546, %v599
          %601 = vst.msk [vmem:[#allocation5 + $0x1] sm:$0x1] %vm544, %v600
        $region40: #{tpu_custom_call.1} parent=35 // pred_fallthru
          _
        %p602 = scmp.eq.s32.totalorder %s22, 1
        // Predicated region
        $region45: #{tpu_custom_call.1} parent=35 // pred_check
          %p603 = pneg %p602
        $region46: #{tpu_custom_call.1} parent=35 // pred_check_branch
          %605 = sbr.rel (%p603) target = $region48
        $region47: #{tpu_custom_call.1} parent=35 // pred_region
          %p606 = scmp.eq.s32.totalorder %s23, 0
          // Predicated region
          $region49: #{tpu_custom_call.1} parent=47 // pred_check
            %p607 = pneg %p606
          $region50: #{tpu_custom_call.1} parent=47 // pred_check_branch
            %609 = sbr.rel (%p607) target = $region52
          $region51: #{tpu_custom_call.1} parent=47 // pred_region
            %v610 = vld [vmem:[#allocation5] sm:$0x1]
            %v611 = vld [vmem:[#allocation5 + $0x1] sm:$0x1]
            %v612 = vmul.f32 %v610, 0.001953125
            %v613 = vmul.f32 %v611, 0.001953125
            %v614 = vmul.f32 %v612, %v612
            %v615 = vsub.f32 %v613, %v614
            %v616 = vmax.f32 %v615, 0.0
            %vm617 = vcmask 516096
            %618 = vst.msk [vmem:[#allocation5 + $0x2] sm:$0x1] %vm617, %v612
            %v619 = vadd.f32 %v616, 1e-05
            %v620 = vrsqrt.pop %v619
            %621 = vst.msk [vmem:[#allocation5 + $0x3] sm:$0x1] %vm617, %v620
            %vm622 = vcmask 517120
            %623 = vst.msk [vmem:[#allocation5 + $0x4] sm:$0x3] %vm622, 0.0
          $region52: #{tpu_custom_call.1} parent=47 // pred_fallthru
            _
          %v624 = vld [vmem:[#allocation5 + $0x2] sm:$0x1]
          %v625 = vld [vmem:[#allocation5 + $0x3] sm:$0x1]
          %s626 = sshra.s32 %s232, 4
          %s627 = sand.u32 %s232, 15
          %s628 = smul.addr %s626, 8
          %s629 = scalar_lea.vmem [#allocation3], %s628
          %v630 = vld [vmem:[%s629] sm:$0xff]
          %v631 = vld [vmem:[%s629 + $0x8] sm:$0xff]
          %v632 = vld [vmem:[%s629 + $0x10] sm:$0xff]
          %v633 = vld [vmem:[%s629 + $0x18] sm:$0xff]
          %v634 = vld [vmem:[%s629 + $0x20] sm:$0xff]
          %v635 = vld [vmem:[%s629 + $0x28] sm:$0xff]
          %v636 = vld [vmem:[%s629 + $0x30] sm:$0xff]
          %v637 = vld [vmem:[%s629 + $0x38] sm:$0xff]
          %v638 = vunpack.c.l.bf16 %v630
          %v639 = vunpack.c.h.bf16 %v630
          %v640 = vunpack.c.l.bf16 %v631
          %v641 = vunpack.c.h.bf16 %v631
          %v642 = vunpack.c.l.bf16 %v632
          %v643 = vunpack.c.h.bf16 %v632
          %v644 = vunpack.c.l.bf16 %v633
          %v645 = vunpack.c.h.bf16 %v633
          %v646 = vunpack.c.l.bf16 %v634
          %v647 = vunpack.c.h.bf16 %v634
          %v648 = vunpack.c.l.bf16 %v635
          %v649 = vunpack.c.h.bf16 %v635
          %v650 = vunpack.c.l.bf16 %v636
          %v651 = vunpack.c.h.bf16 %v636
          %v652 = vunpack.c.l.bf16 %v637
          %v653 = vunpack.c.h.bf16 %v637
          %v654 = vlaneseq
          %v655 = vshrl.u32 %v654, 7
          %v656 = vsub.s32 0, %v655
          %v657 = vrot.slane %v624, %v656
          %v658 = vsub.f32 %v638, %v657
          %v659 = vsub.f32 %v639, %v657
          %v660 = vsub.f32 %v640, %v657
          %v661 = vsub.f32 %v641, %v657
          %v662 = vsub.f32 %v642, %v657
          %v663 = vsub.f32 %v643, %v657
          %v664 = vsub.f32 %v644, %v657
          %v665 = vsub.f32 %v645, %v657
          %v666 = vsub.f32 %v646, %v657
          %v667 = vsub.f32 %v647, %v657
          %v668 = vsub.f32 %v648, %v657
          %v669 = vsub.f32 %v649, %v657
          %v670 = vsub.f32 %v650, %v657
          %v671 = vsub.f32 %v651, %v657
          %v672 = vsub.f32 %v652, %v657
          %v673 = vsub.f32 %v653, %v657
          %v674 = vlaneseq
          %v675 = vshrl.u32 %v674, 7
          %v676 = vsub.s32 0, %v675
          %v677 = vrot.slane %v625, %v676
          %v678 = vmul.f32 %v658, %v677
          %v679 = vmul.f32 %v659, %v677
          %v680 = vmul.f32 %v660, %v677
          %v681 = vmul.f32 %v661, %v677
          %v682 = vmul.f32 %v662, %v677
          %v683 = vmul.f32 %v663, %v677
          %v684 = vmul.f32 %v664, %v677
          %v685 = vmul.f32 %v665, %v677
          %v686 = vmul.f32 %v666, %v677
          %v687 = vmul.f32 %v667, %v677
          %v688 = vmul.f32 %v668, %v677
          %v689 = vmul.f32 %v669, %v677
          %v690 = vmul.f32 %v670, %v677
          %v691 = vmul.f32 %v671, %v677
          %v692 = vmul.f32 %v672, %v677
          %v693 = vmul.f32 %v673, %v677
          %v694 = vpack.c.bf16 %v679, %v678
          %v695 = vpack.c.bf16 %v681, %v680
          %v696 = vpack.c.bf16 %v683, %v682
          %v697 = vpack.c.bf16 %v685, %v684
          %v698 = vpack.c.bf16 %v687, %v686
          %v699 = vpack.c.bf16 %v689, %v688
          %v700 = vpack.c.bf16 %v691, %v690
          %v701 = vpack.c.bf16 %v693, %v692
          %v702 = vld [vmem:[%s1 + $0x8] sm:$0xf]
          %v703 = vld [vmem:[%s1 + $0xc] sm:$0xf]
          %v704 = vld [vmem:[%s1 + $0x10] sm:$0xf]
          %v705 = vld [vmem:[%s1 + $0x14] sm:$0xf]
          %v706 = vld [vmem:[%s1 + $0x18] sm:$0xf]
          %v707 = vld [vmem:[%s1 + $0x1c] sm:$0xf]
          %v708 = vld [vmem:[%s1 + $0x20] sm:$0xf]
          %v709 = vld [vmem:[%s1 + $0x24] sm:$0xf]
          %v710 = vld [vmem:[%s3 + $0x1] sm:$0x1]
          %v711 = vlaneseq
          %v712 = vshrl.u32 %v711, 7
          %v713 = vsub.s32 0, %v712
          %v714 = vrot.slane %v710, %v713
          %v723 = vunpack.c.l.b16 %v702
          %v724 = vunpack.c.l.b16 %v703
          %v725 = vunpack.c.l.b16 %v704
          %v726 = vunpack.c.l.b16 %v705
          %v727 = vunpack.c.l.b16 %v706
          %v728 = vunpack.c.l.b16 %v707
          %v729 = vunpack.c.l.b16 %v708
          %v730 = vunpack.c.l.b16 %v709
          %v731 = vpack.c.b16 %v724, %v723
          %v732 = vpack.c.b16 %v726, %v725
          %v733 = vpack.c.b16 %v728, %v727
          %v734 = vpack.c.b16 %v730, %v729
          %vm739 = vcmask 523264
          %v741 = vsel %vm739, %v694, 0
          %v744 = vsel %vm739, %v695, 0
          %v747 = vsel %vm739, %v696, 0
          %v750 = vsel %vm739, %v697, 0
          %v753 = vsel %vm739, %v698, 0
          %v756 = vsel %vm739, %v699, 0
          %v759 = vsel %vm739, %v700, 0
          %v762 = vsel %vm739, %v701, 0
          %764 = vmatprep.subr.bf16.mxu0 0
          %765 = vmatpush1.bf16.msra.mxu0 %v731
          %766 = vmatprep.subr.bf16.mxu0 0
          %767 = vmatpush1.bf16.msra.mxu0 %v732
          %768 = vmatprep.subr.bf16.mxu0 0
          %769 = vmatpush1.bf16.msra.mxu0 %v733
          %770 = vmatprep.subr.bf16.mxu0 0
          %771 = vmatpush1.bf16.msra.mxu0 %v734
          %772 = vmatprep.subr.bf16.mxu0 0
          %773 = vmatpush1.bf16.msra.mxu0 0
          %774 = vmatprep.subr.bf16.mxu0 0
          %775 = vmatpush1.bf16.msra.mxu0 0
          %776 = vmatprep.subr.bf16.mxu0 0
          %777 = vmatpush1.bf16.msra.mxu0 0
          %778 = vmatprep.subr.bf16.mxu0 0
          %779 = vmatpush1.bf16.msra.mxu0 0
          %780 = vmatprep.subr.bf16.mxu0 0
          %781 = vmatpush1.bf16.msra.mxu0 0
          %782 = vmatprep.subr.bf16.mxu0 0
          %783 = vmatpush1.bf16.msra.mxu0 0
          %784 = vmatprep.subr.bf16.mxu0 0
          %785 = vmatpush1.bf16.msra.mxu0 0
          %786 = vmatprep.subr.bf16.mxu0 0
          %787 = vmatpush1.bf16.msra.mxu0 0
          %788 = vmatprep.subr.bf16.mxu0 0
          %789 = vmatpush1.bf16.msra.mxu0 0
          %790 = vmatprep.subr.bf16.mxu0 0
          %791 = vmatpush1.bf16.msra.mxu0 0
          %792 = vmatprep.subr.bf16.mxu0 0
          %793 = vmatpush1.bf16.msra.mxu0 0
          %794 = vmatprep.subr.bf16.mxu0 0
          %795 = vmatpush1.bf16.msra.mxu0 0
          %796 = vmatprep.mubr.bf16.mxu0 0
          %797 = vmatmul.mubr.bf16.gmra.mrb[0].mxu0 %v741
          %v798 = vpop.f32.mrb[0].mxu0
          %v799 = vadd.f32 %v714, %v798
          %v800 = vpop.f32.mrb[0].mxu0
          %v801 = vpop.f32.mrb[0].mxu0
          %v802 = vadd.f32 %v714, %v801
          %v803 = vpop.f32.mrb[0].mxu0
          %804 = vmatprep.mubr.bf16.mxu0 0
          %805 = vmatmul.mubr.bf16.gmra.mrb[0].mxu0 %v744
          %v806 = vpop.f32.mrb[0].mxu0
          %v807 = vadd.f32 %v714, %v806
          %v808 = vpop.f32.mrb[0].mxu0
          %v809 = vpop.f32.mrb[0].mxu0
          %v810 = vadd.f32 %v714, %v809
          %v811 = vpop.f32.mrb[0].mxu0
          %812 = vmatprep.mubr.bf16.mxu0 0
          %813 = vmatmul.mubr.bf16.gmra.mrb[0].mxu0 %v747
          %v814 = vpop.f32.mrb[0].mxu0
          %v815 = vadd.f32 %v714, %v814
          %v816 = vpop.f32.mrb[0].mxu0
          %v817 = vpop.f32.mrb[0].mxu0
          %v818 = vadd.f32 %v714, %v817
          %v819 = vpop.f32.mrb[0].mxu0
          %820 = vmatprep.mubr.bf16.mxu0 0
          %821 = vmatmul.mubr.bf16.gmra.mrb[0].mxu0 %v750
          %v822 = vpop.f32.mrb[0].mxu0
          %v823 = vadd.f32 %v714, %v822
          %v824 = vpop.f32.mrb[0].mxu0
          %v825 = vpop.f32.mrb[0].mxu0
          %v826 = vadd.f32 %v714, %v825
          %v827 = vpop.f32.mrb[0].mxu0
          %828 = vmatprep.mubr.bf16.mxu0 0
          %829 = vmatmul.mubr.bf16.gmra.mrb[0].mxu0 %v753
          %v830 = vpop.f32.mrb[0].mxu0
          %v831 = vadd.f32 %v714, %v830
          %v832 = vpop.f32.mrb[0].mxu0
          %v833 = vpop.f32.mrb[0].mxu0
          %v834 = vadd.f32 %v714, %v833
          %v835 = vpop.f32.mrb[0].mxu0
          %836 = vmatprep.mubr.bf16.mxu0 0
          %837 = vmatmul.mubr.bf16.gmra.mrb[0].mxu0 %v756
          %v838 = vpop.f32.mrb[0].mxu0
          %v839 = vadd.f32 %v714, %v838
          %v840 = vpop.f32.mrb[0].mxu0
          %v841 = vpop.f32.mrb[0].mxu0
          %v842 = vadd.f32 %v714, %v841
          %v843 = vpop.f32.mrb[0].mxu0
          %844 = vmatprep.mubr.bf16.mxu0 0
          %845 = vmatmul.mubr.bf16.gmra.mrb[0].mxu0 %v759
          %v846 = vpop.f32.mrb[0].mxu0
          %v847 = vadd.f32 %v714, %v846
          %v848 = vpop.f32.mrb[0].mxu0
          %v849 = vpop.f32.mrb[0].mxu0
          %v850 = vadd.f32 %v714, %v849
          %v851 = vpop.f32.mrb[0].mxu0
          %852 = vmatprep.mubr.bf16.mxu0 0
          %853 = vmatmul.mubr.bf16.gmra.mrb[0].mxu0 %v762
          %v854 = vpop.f32.mrb[0].mxu0
          %v855 = vadd.f32 %v714, %v854
          %v856 = vpop.f32.mrb[0].mxu0
          %v857 = vpop.f32.mrb[0].mxu0
          %v858 = vadd.f32 %v714, %v857
          %v859 = vpop.f32.mrb[0].mxu0
          %860 = vdwg.mxu0
          %v861 = vmax.f32 %v799, 0.0
          %v862 = vmax.f32 %v802, 0.0
          %v863 = vmax.f32 %v807, 0.0
          %v864 = vmax.f32 %v810, 0.0
          %v865 = vmax.f32 %v815, 0.0
          %v866 = vmax.f32 %v818, 0.0
          %v867 = vmax.f32 %v823, 0.0
          %v868 = vmax.f32 %v826, 0.0
          %v869 = vmax.f32 %v831, 0.0
          %v870 = vmax.f32 %v834, 0.0
          %v871 = vmax.f32 %v839, 0.0
          %v872 = vmax.f32 %v842, 0.0
          %v873 = vmax.f32 %v847, 0.0
          %v874 = vmax.f32 %v850, 0.0
          %v875 = vmax.f32 %v855, 0.0
          %v876 = vmax.f32 %v858, 0.0
          %v877 = vld [vmem:[%s1 + $0x28] sm:$0xf]
          %v878 = vld [vmem:[%s1 + $0x2c] sm:$0xf]
          %v879 = vld [vmem:[%s1 + $0x30] sm:$0xf]
          %v880 = vld [vmem:[%s1 + $0x34] sm:$0xf]
          %v881 = vld [vmem:[%s1 + $0x38] sm:$0xf]
          %v882 = vld [vmem:[%s1 + $0x3c] sm:$0xf]
          %v883 = vld [vmem:[%s1 + $0x40] sm:$0xf]
          %v884 = vld [vmem:[%s1 + $0x44] sm:$0xf]
          %v885 = vpack.c.bf16 %v862, %v861
          %v886 = vpack.c.bf16 %v864, %v863
          %v887 = vpack.c.bf16 %v866, %v865
          %v888 = vpack.c.bf16 %v868, %v867
          %v889 = vpack.c.bf16 %v870, %v869
          %v890 = vpack.c.bf16 %v872, %v871
          %v891 = vpack.c.bf16 %v874, %v873
          %v892 = vpack.c.bf16 %v876, %v875
          %v901 = vunpack.c.l.b16 %v877
          %v902 = vunpack.c.l.b16 %v878
          %v903 = vunpack.c.l.b16 %v879
          %v904 = vunpack.c.l.b16 %v880
          %v905 = vunpack.c.l.b16 %v881
          %v906 = vunpack.c.l.b16 %v882
          %v907 = vunpack.c.l.b16 %v883
          %v908 = vunpack.c.l.b16 %v884
          %v909 = vpack.c.b16 %v902, %v901
          %v910 = vpack.c.b16 %v904, %v903
          %v911 = vpack.c.b16 %v906, %v905
          %v912 = vpack.c.b16 %v908, %v907
          %v918 = vsel %vm739, %v885, 0
          %v921 = vsel %vm739, %v886, 0
          %v924 = vsel %vm739, %v887, 0
          %v927 = vsel %vm739, %v888, 0
          %v930 = vsel %vm739, %v889, 0
          %v933 = vsel %vm739, %v890, 0
          %v936 = vsel %vm739, %v891, 0
          %v939 = vsel %vm739, %v892, 0
          %941 = vmatprep.subr.bf16.mxu0 0
          %942 = vmatpush1.bf16.msra.mxu0 %v909
          %943 = vmatprep.subr.bf16.mxu0 0
          %944 = vmatpush1.bf16.msra.mxu0 %v910
          %945 = vmatprep.subr.bf16.mxu0 0
          %946 = vmatpush1.bf16.msra.mxu0 %v911
          %947 = vmatprep.subr.bf16.mxu0 0
          %948 = vmatpush1.bf16.msra.mxu0 %v912
          %949 = vmatprep.subr.bf16.mxu0 0
          %950 = vmatpush1.bf16.msra.mxu0 0
          %951 = vmatprep.subr.bf16.mxu0 0
          %952 = vmatpush1.bf16.msra.mxu0 0
          %953 = vmatprep.subr.bf16.mxu0 0
          %954 = vmatpush1.bf16.msra.mxu0 0
          %955 = vmatprep.subr.bf16.mxu0 0
          %956 = vmatpush1.bf16.msra.mxu0 0
          %957 = vmatprep.subr.bf16.mxu0 0
          %958 = vmatpush1.bf16.msra.mxu0 0
          %959 = vmatprep.subr.bf16.mxu0 0
          %960 = vmatpush1.bf16.msra.mxu0 0
          %961 = vmatprep.subr.bf16.mxu0 0
          %962 = vmatpush1.bf16.msra.mxu0 0
          %963 = vmatprep.subr.bf16.mxu0 0
          %964 = vmatpush1.bf16.msra.mxu0 0
          %965 = vmatprep.subr.bf16.mxu0 0
          %966 = vmatpush1.bf16.msra.mxu0 0
          %967 = vmatprep.subr.bf16.mxu0 0
          %968 = vmatpush1.bf16.msra.mxu0 0
          %969 = vmatprep.subr.bf16.mxu0 0
          %970 = vmatpush1.bf16.msra.mxu0 0
          %971 = vmatprep.subr.bf16.mxu0 0
          %972 = vmatpush1.bf16.msra.mxu0 0
          %973 = vmatprep.mubr.bf16.mxu0 0
          %974 = vmatmul.mubr.bf16.gmra.mrb[0].mxu0 %v918
          %v975 = vpop.f32.mrb[0].mxu0
          %v976 = vadd.f32 0.0, %v975
          %v977 = vpop.f32.mrb[0].mxu0
          %v978 = vpop.f32.mrb[0].mxu0
          %v979 = vadd.f32 0.0, %v978
          %v980 = vpop.f32.mrb[0].mxu0
          %981 = vmatprep.mubr.bf16.mxu0 0
          %982 = vmatmul.mubr.bf16.gmra.mrb[0].mxu0 %v921
          %v983 = vpop.f32.mrb[0].mxu0
          %v984 = vadd.f32 0.0, %v983
          %v985 = vpop.f32.mrb[0].mxu0
          %v986 = vpop.f32.mrb[0].mxu0
          %v987 = vadd.f32 0.0, %v986
          %v988 = vpop.f32.mrb[0].mxu0
          %989 = vmatprep.mubr.bf16.mxu0 0
          %990 = vmatmul.mubr.bf16.gmra.mrb[0].mxu0 %v924
          %v991 = vpop.f32.mrb[0].mxu0
          %v992 = vadd.f32 0.0, %v991
          %v993 = vpop.f32.mrb[0].mxu0
          %v994 = vpop.f32.mrb[0].mxu0
          %v995 = vadd.f32 0.0, %v994
          %v996 = vpop.f32.mrb[0].mxu0
          %997 = vmatprep.mubr.bf16.mxu0 0
          %998 = vmatmul.mubr.bf16.gmra.mrb[0].mxu0 %v927
          %v999 = vpop.f32.mrb[0].mxu0
          %v1000 = vadd.f32 0.0, %v999
          %v1001 = vpop.f32.mrb[0].mxu0
          %v1002 = vpop.f32.mrb[0].mxu0
          %v1003 = vadd.f32 0.0, %v1002
          %v1004 = vpop.f32.mrb[0].mxu0
          %1005 = vmatprep.mubr.bf16.mxu0 0
          %1006 = vmatmul.mubr.bf16.gmra.mrb[0].mxu0 %v930
          %v1007 = vpop.f32.mrb[0].mxu0
          %v1008 = vadd.f32 0.0, %v1007
          %v1009 = vpop.f32.mrb[0].mxu0
          %v1010 = vpop.f32.mrb[0].mxu0
          %v1011 = vadd.f32 0.0, %v1010
          %v1012 = vpop.f32.mrb[0].mxu0
          %1013 = vmatprep.mubr.bf16.mxu0 0
          %1014 = vmatmul.mubr.bf16.gmra.mrb[0].mxu0 %v933
          %v1015 = vpop.f32.mrb[0].mxu0
          %v1016 = vadd.f32 0.0, %v1015
          %v1017 = vpop.f32.mrb[0].mxu0
          %v1018 = vpop.f32.mrb[0].mxu0
          %v1019 = vadd.f32 0.0, %v1018
          %v1020 = vpop.f32.mrb[0].mxu0
          %1021 = vmatprep.mubr.bf16.mxu0 0
          %1022 = vmatmul.mubr.bf16.gmra.mrb[0].mxu0 %v936
          %v1023 = vpop.f32.mrb[0].mxu0
          %v1024 = vadd.f32 0.0, %v1023
          %v1025 = vpop.f32.mrb[0].mxu0
          %v1026 = vpop.f32.mrb[0].mxu0
          %v1027 = vadd.f32 0.0, %v1026
          %v1028 = vpop.f32.mrb[0].mxu0
          %1029 = vmatprep.mubr.bf16.mxu0 0
          %1030 = vmatmul.mubr.bf16.gmra.mrb[0].mxu0 %v939
          %v1031 = vpop.f32.mrb[0].mxu0
          %v1032 = vadd.f32 0.0, %v1031
          %v1033 = vpop.f32.mrb[0].mxu0
          %v1034 = vpop.f32.mrb[0].mxu0
          %v1035 = vadd.f32 0.0, %v1034
          %v1036 = vpop.f32.mrb[0].mxu0
          %1037 = vdwg.mxu0
          %v1038 = vpack.c.bf16 %v979, %v976
          %v1039 = vpack.c.bf16 %v987, %v984
          %v1040 = vpack.c.bf16 %v995, %v992
          %v1041 = vpack.c.bf16 %v1003, %v1000
          %v1042 = vpack.c.bf16 %v1011, %v1008
          %v1043 = vpack.c.bf16 %v1019, %v1016
          %v1044 = vpack.c.bf16 %v1027, %v1024
          %v1045 = vpack.c.bf16 %v1035, %v1032
          %s1046 = smul.addr %s626, 8
          %s1047 = scalar_lea.vmem [#allocation4], %s1046
          %1048 = vst.msk [vmem:[%s1047] sm:$0xff] %vm739, %v1038
          %1049 = vst.msk [vmem:[%s1047 + $0x8] sm:$0xff] %vm739, %v1039
          %1050 = vst.msk [vmem:[%s1047 + $0x10] sm:$0xff] %vm739, %v1040
          %1051 = vst.msk [vmem:[%s1047 + $0x18] sm:$0xff] %vm739, %v1041
          %1052 = vst.msk [vmem:[%s1047 + $0x20] sm:$0xff] %vm739, %v1042
          %1053 = vst.msk [vmem:[%s1047 + $0x28] sm:$0xff] %vm739, %v1043
          %1054 = vst.msk [vmem:[%s1047 + $0x30] sm:$0xff] %vm739, %v1044
          %1055 = vst.msk [vmem:[%s1047 + $0x38] sm:$0xff] %vm739, %v1045
          %v1056 = vld [vmem:[#allocation5 + $0x4] sm:$0x1]
          %v1057 = vsel %vm739, %v976, 0.0
          %v1058 = vsel %vm739, %v979, 0.0
          %v1059 = vadd.f32 %v1057, %v1058
          %v1060 = vsel %vm739, %v984, 0.0
          %v1061 = vadd.f32 %v1059, %v1060
          %v1062 = vsel %vm739, %v987, 0.0
          %v1063 = vadd.f32 %v1061, %v1062
          %v1064 = vsel %vm739, %v992, 0.0
          %v1065 = vadd.f32 %v1063, %v1064
          %v1066 = vsel %vm739, %v995, 0.0
          %v1067 = vadd.f32 %v1065, %v1066
          %v1068 = vsel %vm739, %v1000, 0.0
          %v1069 = vadd.f32 %v1067, %v1068
          %v1070 = vsel %vm739, %v1003, 0.0
          %v1071 = vadd.f32 %v1069, %v1070
          %v1072 = vsel %vm739, %v1008, 0.0
          %v1073 = vadd.f32 %v1071, %v1072
          %v1074 = vsel %vm739, %v1011, 0.0
          %v1075 = vadd.f32 %v1073, %v1074
          %v1076 = vsel %vm739, %v1016, 0.0
          %v1077 = vadd.f32 %v1075, %v1076
          %v1078 = vsel %vm739, %v1019, 0.0
          %v1079 = vadd.f32 %v1077, %v1078
          %v1080 = vsel %vm739, %v1024, 0.0
          %v1081 = vadd.f32 %v1079, %v1080
          %v1082 = vsel %vm739, %v1027, 0.0
          %v1083 = vadd.f32 %v1081, %v1082
          %v1084 = vsel %vm739, %v1032, 0.0
          %v1085 = vadd.f32 %v1083, %v1084
          %v1086 = vsel %vm739, %v1035, 0.0
          %v1087 = vadd.f32 %v1085, %v1086
          %v1088 = vrot.slane %v1087, 4
          %v1089 = vadd.f32 %v1087, %v1088
          %v1090 = vrot.slane %v1089, 2
          %v1091 = vadd.f32 %v1089, %v1090
          %v1092 = vrot.slane %v1091, 1
          %v1093 = vadd.f32 %v1091, %v1092
          %v1094 = vadd.f32 %v1056, %v1093
          %vm1095 = vcmask 516096
          %1096 = vst.msk [vmem:[#allocation5 + $0x4] sm:$0x1] %vm1095, %v1094
          %v1097 = vld [vmem:[#allocation5 + $0x5] sm:$0x1]
          %v1098 = vmul.f32 %v976, %v976
          %v1099 = vmul.f32 %v979, %v979
          %v1100 = vmul.f32 %v984, %v984
          %v1101 = vmul.f32 %v987, %v987
          %v1102 = vmul.f32 %v992, %v992
          %v1103 = vmul.f32 %v995, %v995
          %v1104 = vmul.f32 %v1000, %v1000
          %v1105 = vmul.f32 %v1003, %v1003
          %v1106 = vmul.f32 %v1008, %v1008
          %v1107 = vmul.f32 %v1011, %v1011
          %v1108 = vmul.f32 %v1016, %v1016
          %v1109 = vmul.f32 %v1019, %v1019
          %v1110 = vmul.f32 %v1024, %v1024
          %v1111 = vmul.f32 %v1027, %v1027
          %v1112 = vmul.f32 %v1032, %v1032
          %v1113 = vmul.f32 %v1035, %v1035
          %v1114 = vsel %vm739, %v1098, 0.0
          %v1115 = vsel %vm739, %v1099, 0.0
          %v1116 = vadd.f32 %v1114, %v1115
          %v1117 = vsel %vm739, %v1100, 0.0
          %v1118 = vadd.f32 %v1116, %v1117
          %v1119 = vsel %vm739, %v1101, 0.0
          %v1120 = vadd.f32 %v1118, %v1119
          %v1121 = vsel %vm739, %v1102, 0.0
          %v1122 = vadd.f32 %v1120, %v1121
          %v1123 = vsel %vm739, %v1103, 0.0
          %v1124 = vadd.f32 %v1122, %v1123
          %v1125 = vsel %vm739, %v1104, 0.0
          %v1126 = vadd.f32 %v1124, %v1125
          %v1127 = vsel %vm739, %v1105, 0.0
          %v1128 = vadd.f32 %v1126, %v1127
          %v1129 = vsel %vm739, %v1106, 0.0
          %v1130 = vadd.f32 %v1128, %v1129
          %v1131 = vsel %vm739, %v1107, 0.0
          %v1132 = vadd.f32 %v1130, %v1131
          %v1133 = vsel %vm739, %v1108, 0.0
          %v1134 = vadd.f32 %v1132, %v1133
          %v1135 = vsel %vm739, %v1109, 0.0
          %v1136 = vadd.f32 %v1134, %v1135
          %v1137 = vsel %vm739, %v1110, 0.0
          %v1138 = vadd.f32 %v1136, %v1137
          %v1139 = vsel %vm739, %v1111, 0.0
          %v1140 = vadd.f32 %v1138, %v1139
          %v1141 = vsel %vm739, %v1112, 0.0
          %v1142 = vadd.f32 %v1140, %v1141
          %v1143 = vsel %vm739, %v1113, 0.0
          %v1144 = vadd.f32 %v1142, %v1143
          %v1145 = vrot.slane %v1144, 4
          %v1146 = vadd.f32 %v1144, %v1145
          %v1147 = vrot.slane %v1146, 2
          %v1148 = vadd.f32 %v1146, %v1147
          %v1149 = vrot.slane %v1148, 1
          %v1150 = vadd.f32 %v1148, %v1149
          %v1151 = vadd.f32 %v1097, %v1150
          %1152 = vst.msk [vmem:[#allocation5 + $0x5] sm:$0x1] %vm1095, %v1151
        $region48: #{tpu_custom_call.1} parent=35 // pred_fallthru
          _
        %p1153 = scmp.eq.s32.totalorder %s22, 2
        // Predicated region
        $region53: #{tpu_custom_call.1} parent=35 // pred_check
          %p1154 = pneg %p1153
        $region54: #{tpu_custom_call.1} parent=35 // pred_check_branch
          %1156 = sbr.rel (%p1154) target = $region56
        $region55: #{tpu_custom_call.1} parent=35 // pred_region
          %p1157 = scmp.eq.s32.totalorder %s23, 0
          // Predicated region
          $region57: #{tpu_custom_call.1} parent=55 // pred_check
            %p1158 = pneg %p1157
          $region58: #{tpu_custom_call.1} parent=55 // pred_check_branch
            %1160 = sbr.rel (%p1158) target = $region60
          $region59: #{tpu_custom_call.1} parent=55 // pred_region
            %v1161 = vld [vmem:[#allocation5 + $0x4] sm:$0x1]
            %v1162 = vld [vmem:[#allocation5 + $0x5] sm:$0x1]
            %v1163 = vmul.f32 %v1161, 0.001953125
            %v1164 = vmul.f32 %v1162, 0.001953125
            %v1165 = vmul.f32 %v1163, %v1163
            %v1166 = vsub.f32 %v1164, %v1165
            %v1167 = vmax.f32 %v1166, 0.0
            %vm1168 = vcmask 516096
            %1169 = vst.msk [vmem:[#allocation5 + $0x6] sm:$0x1] %vm1168, %v1163
            %v1170 = vadd.f32 %v1167, 1e-05
            %v1171 = vrsqrt.pop %v1170
            %1172 = vst.msk [vmem:[#allocation5 + $0x7] sm:$0x1] %vm1168, %v1171
          $region60: #{tpu_custom_call.1} parent=55 // pred_fallthru
            _
          %v1173 = vld [vmem:[#allocation5 + $0x6] sm:$0x1]
          %v1174 = vld [vmem:[#allocation5 + $0x7] sm:$0x1]
          %s1175 = sshra.s32 %s232, 4
          %s1176 = sand.u32 %s232, 15
          %s1177 = smul.addr %s1175, 8
          %s1178 = scalar_lea.vmem [#allocation4], %s1177
          %v1179 = vld [vmem:[%s1178] sm:$0xff]
          %v1180 = vld [vmem:[%s1178 + $0x8] sm:$0xff]
          %v1181 = vld [vmem:[%s1178 + $0x10] sm:$0xff]
          %v1182 = vld [vmem:[%s1178 + $0x18] sm:$0xff]
          %v1183 = vld [vmem:[%s1178 + $0x20] sm:$0xff]
          %v1184 = vld [vmem:[%s1178 + $0x28] sm:$0xff]
          %v1185 = vld [vmem:[%s1178 + $0x30] sm:$0xff]
          %v1186 = vld [vmem:[%s1178 + $0x38] sm:$0xff]
          %v1187 = vunpack.c.l.bf16 %v1179
          %v1188 = vunpack.c.h.bf16 %v1179
          %v1189 = vunpack.c.l.bf16 %v1180
          %v1190 = vunpack.c.h.bf16 %v1180
          %v1191 = vunpack.c.l.bf16 %v1181
          %v1192 = vunpack.c.h.bf16 %v1181
          %v1193 = vunpack.c.l.bf16 %v1182
          %v1194 = vunpack.c.h.bf16 %v1182
          %v1195 = vunpack.c.l.bf16 %v1183
          %v1196 = vunpack.c.h.bf16 %v1183
          %v1197 = vunpack.c.l.bf16 %v1184
          %v1198 = vunpack.c.h.bf16 %v1184
          %v1199 = vunpack.c.l.bf16 %v1185
          %v1200 = vunpack.c.h.bf16 %v1185
          %v1201 = vunpack.c.l.bf16 %v1186
          %v1202 = vunpack.c.h.bf16 %v1186
          %v1203 = vlaneseq
          %v1204 = vshrl.u32 %v1203, 7
          %v1205 = vsub.s32 0, %v1204
          %v1206 = vrot.slane %v1173, %v1205
          %v1207 = vsub.f32 %v1187, %v1206
          %v1208 = vsub.f32 %v1188, %v1206
          %v1209 = vsub.f32 %v1189, %v1206
          %v1210 = vsub.f32 %v1190, %v1206
          %v1211 = vsub.f32 %v1191, %v1206
          %v1212 = vsub.f32 %v1192, %v1206
          %v1213 = vsub.f32 %v1193, %v1206
          %v1214 = vsub.f32 %v1194, %v1206
          %v1215 = vsub.f32 %v1195, %v1206
          %v1216 = vsub.f32 %v1196, %v1206
          %v1217 = vsub.f32 %v1197, %v1206
          %v1218 = vsub.f32 %v1198, %v1206
          %v1219 = vsub.f32 %v1199, %v1206
          %v1220 = vsub.f32 %v1200, %v1206
          %v1221 = vsub.f32 %v1201, %v1206
          %v1222 = vsub.f32 %v1202, %v1206
          %v1223 = vlaneseq
          %v1224 = vshrl.u32 %v1223, 7
          %v1225 = vsub.s32 0, %v1224
          %v1226 = vrot.slane %v1174, %v1225
          %v1227 = vmul.f32 %v1207, %v1226
          %v1228 = vmul.f32 %v1208, %v1226
          %v1229 = vmul.f32 %v1209, %v1226
          %v1230 = vmul.f32 %v1210, %v1226
          %v1231 = vmul.f32 %v1211, %v1226
          %v1232 = vmul.f32 %v1212, %v1226
          %v1233 = vmul.f32 %v1213, %v1226
          %v1234 = vmul.f32 %v1214, %v1226
          %v1235 = vmul.f32 %v1215, %v1226
          %v1236 = vmul.f32 %v1216, %v1226
          %v1237 = vmul.f32 %v1217, %v1226
          %v1238 = vmul.f32 %v1218, %v1226
          %v1239 = vmul.f32 %v1219, %v1226
          %v1240 = vmul.f32 %v1220, %v1226
          %v1241 = vmul.f32 %v1221, %v1226
          %v1242 = vmul.f32 %v1222, %v1226
          %v1243 = vpack.c.bf16 %v1228, %v1227
          %v1244 = vpack.c.bf16 %v1230, %v1229
          %v1245 = vpack.c.bf16 %v1232, %v1231
          %v1246 = vpack.c.bf16 %v1234, %v1233
          %v1247 = vpack.c.bf16 %v1236, %v1235
          %v1248 = vpack.c.bf16 %v1238, %v1237
          %v1249 = vpack.c.bf16 %v1240, %v1239
          %v1250 = vpack.c.bf16 %v1242, %v1241
          %v1251 = vld [vmem:[%s1 + $0x48] sm:$0xf]
          %v1252 = vld [vmem:[%s1 + $0x4c] sm:$0xf]
          %v1253 = vld [vmem:[%s1 + $0x50] sm:$0xf]
          %v1254 = vld [vmem:[%s1 + $0x54] sm:$0xf]
          %v1255 = vld [vmem:[%s1 + $0x58] sm:$0xf]
          %v1256 = vld [vmem:[%s1 + $0x5c] sm:$0xf]
          %v1257 = vld [vmem:[%s1 + $0x60] sm:$0xf]
          %v1258 = vld [vmem:[%s1 + $0x64] sm:$0xf]
          %v1259 = vld [vmem:[%s3 + $0x2] sm:$0x1]
          %v1260 = vlaneseq
          %v1261 = vshrl.u32 %v1260, 7
          %v1262 = vsub.s32 0, %v1261
          %v1263 = vrot.slane %v1259, %v1262
          %v1272 = vunpack.c.l.b16 %v1251
          %v1273 = vunpack.c.l.b16 %v1252
          %v1274 = vunpack.c.l.b16 %v1253
          %v1275 = vunpack.c.l.b16 %v1254
          %v1276 = vunpack.c.l.b16 %v1255
          %v1277 = vunpack.c.l.b16 %v1256
          %v1278 = vunpack.c.l.b16 %v1257
          %v1279 = vunpack.c.l.b16 %v1258
          %v1280 = vpack.c.b16 %v1273, %v1272
          %v1281 = vpack.c.b16 %v1275, %v1274
          %v1282 = vpack.c.b16 %v1277, %v1276
          %v1283 = vpack.c.b16 %v1279, %v1278
          %vm1288 = vcmask 523264
          %v1290 = vsel %vm1288, %v1243, 0
          %v1293 = vsel %vm1288, %v1244, 0
          %v1296 = vsel %vm1288, %v1245, 0
          %v1299 = vsel %vm1288, %v1246, 0
          %v1302 = vsel %vm1288, %v1247, 0
          %v1305 = vsel %vm1288, %v1248, 0
          %v1308 = vsel %vm1288, %v1249, 0
          %v1311 = vsel %vm1288, %v1250, 0
          %1313 = vmatprep.subr.bf16.mxu0 0
          %1314 = vmatpush1.bf16.msra.mxu0 %v1280
          %1315 = vmatprep.subr.bf16.mxu0 0
          %1316 = vmatpush1.bf16.msra.mxu0 %v1281
          %1317 = vmatprep.subr.bf16.mxu0 0
          %1318 = vmatpush1.bf16.msra.mxu0 %v1282
          %1319 = vmatprep.subr.bf16.mxu0 0
          %1320 = vmatpush1.bf16.msra.mxu0 %v1283
          %1321 = vmatprep.subr.bf16.mxu0 0
          %1322 = vmatpush1.bf16.msra.mxu0 0
          %1323 = vmatprep.subr.bf16.mxu0 0
          %1324 = vmatpush1.bf16.msra.mxu0 0
          %1325 = vmatprep.subr.bf16.mxu0 0
          %1326 = vmatpush1.bf16.msra.mxu0 0
          %1327 = vmatprep.subr.bf16.mxu0 0
          %1328 = vmatpush1.bf16.msra.mxu0 0
          %1329 = vmatprep.subr.bf16.mxu0 0
          %1330 = vmatpush1.bf16.msra.mxu0 0
          %1331 = vmatprep.subr.bf16.mxu0 0
          %1332 = vmatpush1.bf16.msra.mxu0 0
          %1333 = vmatprep.subr.bf16.mxu0 0
          %1334 = vmatpush1.bf16.msra.mxu0 0
          %1335 = vmatprep.subr.bf16.mxu0 0
          %1336 = vmatpush1.bf16.msra.mxu0 0
          %1337 = vmatprep.subr.bf16.mxu0 0
          %1338 = vmatpush1.bf16.msra.mxu0 0
          %1339 = vmatprep.subr.bf16.mxu0 0
          %1340 = vmatpush1.bf16.msra.mxu0 0
          %1341 = vmatprep.subr.bf16.mxu0 0
          %1342 = vmatpush1.bf16.msra.mxu0 0
          %1343 = vmatprep.subr.bf16.mxu0 0
          %1344 = vmatpush1.bf16.msra.mxu0 0
          %1345 = vmatprep.mubr.bf16.mxu0 0
          %1346 = vmatmul.mubr.bf16.gmra.mrb[0].mxu0 %v1290
          %v1347 = vpop.f32.mrb[0].mxu0
          %v1348 = vadd.f32 %v1263, %v1347
          %v1349 = vpop.f32.mrb[0].mxu0
          %v1350 = vpop.f32.mrb[0].mxu0
          %v1351 = vadd.f32 %v1263, %v1350
          %v1352 = vpop.f32.mrb[0].mxu0
          %1353 = vmatprep.mubr.bf16.mxu0 0
          %1354 = vmatmul.mubr.bf16.gmra.mrb[0].mxu0 %v1293
          %v1355 = vpop.f32.mrb[0].mxu0
          %v1356 = vadd.f32 %v1263, %v1355
          %v1357 = vpop.f32.mrb[0].mxu0
          %v1358 = vpop.f32.mrb[0].mxu0
          %v1359 = vadd.f32 %v1263, %v1358
          %v1360 = vpop.f32.mrb[0].mxu0
          %1361 = vmatprep.mubr.bf16.mxu0 0
          %1362 = vmatmul.mubr.bf16.gmra.mrb[0].mxu0 %v1296
          %v1363 = vpop.f32.mrb[0].mxu0
          %v1364 = vadd.f32 %v1263, %v1363
          %v1365 = vpop.f32.mrb[0].mxu0
          %v1366 = vpop.f32.mrb[0].mxu0
          %v1367 = vadd.f32 %v1263, %v1366
          %v1368 = vpop.f32.mrb[0].mxu0
          %1369 = vmatprep.mubr.bf16.mxu0 0
          %1370 = vmatmul.mubr.bf16.gmra.mrb[0].mxu0 %v1299
          %v1371 = vpop.f32.mrb[0].mxu0
          %v1372 = vadd.f32 %v1263, %v1371
          %v1373 = vpop.f32.mrb[0].mxu0
          %v1374 = vpop.f32.mrb[0].mxu0
          %v1375 = vadd.f32 %v1263, %v1374
          %v1376 = vpop.f32.mrb[0].mxu0
          %1377 = vmatprep.mubr.bf16.mxu0 0
          %1378 = vmatmul.mubr.bf16.gmra.mrb[0].mxu0 %v1302
          %v1379 = vpop.f32.mrb[0].mxu0
          %v1380 = vadd.f32 %v1263, %v1379
          %v1381 = vpop.f32.mrb[0].mxu0
          %v1382 = vpop.f32.mrb[0].mxu0
          %v1383 = vadd.f32 %v1263, %v1382
          %v1384 = vpop.f32.mrb[0].mxu0
          %1385 = vmatprep.mubr.bf16.mxu0 0
          %1386 = vmatmul.mubr.bf16.gmra.mrb[0].mxu0 %v1305
          %v1387 = vpop.f32.mrb[0].mxu0
          %v1388 = vadd.f32 %v1263, %v1387
          %v1389 = vpop.f32.mrb[0].mxu0
          %v1390 = vpop.f32.mrb[0].mxu0
          %v1391 = vadd.f32 %v1263, %v1390
          %v1392 = vpop.f32.mrb[0].mxu0
          %1393 = vmatprep.mubr.bf16.mxu0 0
          %1394 = vmatmul.mubr.bf16.gmra.mrb[0].mxu0 %v1308
          %v1395 = vpop.f32.mrb[0].mxu0
          %v1396 = vadd.f32 %v1263, %v1395
          %v1397 = vpop.f32.mrb[0].mxu0
          %v1398 = vpop.f32.mrb[0].mxu0
          %v1399 = vadd.f32 %v1263, %v1398
          %v1400 = vpop.f32.mrb[0].mxu0
          %1401 = vmatprep.mubr.bf16.mxu0 0
          %1402 = vmatmul.mubr.bf16.gmra.mrb[0].mxu0 %v1311
          %v1403 = vpop.f32.mrb[0].mxu0
          %v1404 = vadd.f32 %v1263, %v1403
          %v1405 = vpop.f32.mrb[0].mxu0
          %v1406 = vpop.f32.mrb[0].mxu0
          %v1407 = vadd.f32 %v1263, %v1406
          %v1408 = vpop.f32.mrb[0].mxu0
          %1409 = vdwg.mxu0
          %v1410 = vmax.f32 %v1348, 0.0
          %v1411 = vmax.f32 %v1351, 0.0
          %v1412 = vmax.f32 %v1356, 0.0
          %v1413 = vmax.f32 %v1359, 0.0
          %v1414 = vmax.f32 %v1364, 0.0
          %v1415 = vmax.f32 %v1367, 0.0
          %v1416 = vmax.f32 %v1372, 0.0
          %v1417 = vmax.f32 %v1375, 0.0
          %v1418 = vmax.f32 %v1380, 0.0
          %v1419 = vmax.f32 %v1383, 0.0
          %v1420 = vmax.f32 %v1388, 0.0
          %v1421 = vmax.f32 %v1391, 0.0
          %v1422 = vmax.f32 %v1396, 0.0
          %v1423 = vmax.f32 %v1399, 0.0
          %v1424 = vmax.f32 %v1404, 0.0
          %v1425 = vmax.f32 %v1407, 0.0
          %v1426 = vld [vmem:[%s3 + $0x3] sm:$0x1]
          %v1427 = vpack.c.bf16 %v1411, %v1410
          %v1428 = vpack.c.bf16 %v1413, %v1412
          %v1429 = vpack.c.bf16 %v1415, %v1414
          %v1430 = vpack.c.bf16 %v1417, %v1416
          %v1431 = vpack.c.bf16 %v1419, %v1418
          %v1432 = vpack.c.bf16 %v1421, %v1420
          %v1433 = vpack.c.bf16 %v1423, %v1422
          %v1434 = vpack.c.bf16 %v1425, %v1424
          %v1435 = vld [vmem:[%s2] sm:$0xf]
          %v1436 = vld [vmem:[%s2 + $0x4] sm:$0xf]
          %v1437 = vld [vmem:[%s2 + $0x8] sm:$0xf]
          %v1438 = vld [vmem:[%s2 + $0xc] sm:$0xf]
          %v1439 = vld [vmem:[%s2 + $0x10] sm:$0xf]
          %v1440 = vld [vmem:[%s2 + $0x14] sm:$0xf]
          %v1441 = vld [vmem:[%s2 + $0x18] sm:$0xf]
          %v1442 = vld [vmem:[%s2 + $0x1c] sm:$0xf]
          %v1443 = vlaneseq
          %v1444 = vshrl.u32 %v1443, 7
          %v1445 = vsub.s32 0, %v1444
          %v1446 = vrot.slane %v1426, %v1445
          %v1455 = vunpack.c.l.b16 %v1435
          %v1456 = vunpack.c.l.b16 %v1436
          %v1457 = vunpack.c.l.b16 %v1437
          %v1458 = vunpack.c.l.b16 %v1438
          %v1459 = vunpack.c.l.b16 %v1439
          %v1460 = vunpack.c.l.b16 %v1440
          %v1461 = vunpack.c.l.b16 %v1441
          %v1462 = vunpack.c.l.b16 %v1442
          %v1463 = vpack.c.b16 %v1456, %v1455
          %v1464 = vpack.c.b16 %v1458, %v1457
          %v1465 = vpack.c.b16 %v1460, %v1459
          %v1466 = vpack.c.b16 %v1462, %v1461
          %v1472 = vsel %vm1288, %v1427, 0
          %v1475 = vsel %vm1288, %v1428, 0
          %v1478 = vsel %vm1288, %v1429, 0
          %v1481 = vsel %vm1288, %v1430, 0
          %v1484 = vsel %vm1288, %v1431, 0
          %v1487 = vsel %vm1288, %v1432, 0
          %v1490 = vsel %vm1288, %v1433, 0
          %v1493 = vsel %vm1288, %v1434, 0
          %1495 = vmatprep.subr.bf16.mxu0 0
          %1496 = vmatpush1.bf16.msra.mxu0 %v1463
          %1497 = vmatprep.subr.bf16.mxu0 0
          %1498 = vmatpush1.bf16.msra.mxu0 %v1464
          %1499 = vmatprep.subr.bf16.mxu0 0
          %1500 = vmatpush1.bf16.msra.mxu0 %v1465
          %1501 = vmatprep.subr.bf16.mxu0 0
          %1502 = vmatpush1.bf16.msra.mxu0 %v1466
          %1503 = vmatprep.subr.bf16.mxu0 0
          %1504 = vmatpush1.bf16.msra.mxu0 0
          %1505 = vmatprep.subr.bf16.mxu0 0
          %1506 = vmatpush1.bf16.msra.mxu0 0
          %1507 = vmatprep.subr.bf16.mxu0 0
          %1508 = vmatpush1.bf16.msra.mxu0 0
          %1509 = vmatprep.subr.bf16.mxu0 0
          %1510 = vmatpush1.bf16.msra.mxu0 0
          %1511 = vmatprep.subr.bf16.mxu0 0
          %1512 = vmatpush1.bf16.msra.mxu0 0
          %1513 = vmatprep.subr.bf16.mxu0 0
          %1514 = vmatpush1.bf16.msra.mxu0 0
          %1515 = vmatprep.subr.bf16.mxu0 0
          %1516 = vmatpush1.bf16.msra.mxu0 0
          %1517 = vmatprep.subr.bf16.mxu0 0
          %1518 = vmatpush1.bf16.msra.mxu0 0
          %1519 = vmatprep.subr.bf16.mxu0 0
          %1520 = vmatpush1.bf16.msra.mxu0 0
          %1521 = vmatprep.subr.bf16.mxu0 0
          %1522 = vmatpush1.bf16.msra.mxu0 0
          %1523 = vmatprep.subr.bf16.mxu0 0
          %1524 = vmatpush1.bf16.msra.mxu0 0
          %1525 = vmatprep.subr.bf16.mxu0 0
          %1526 = vmatpush1.bf16.msra.mxu0 0
          %1527 = vmatprep.mubr.bf16.mxu0 0
          %1528 = vmatmul.mubr.bf16.gmra.mrb[0].mxu0 %v1472
          %v1529 = vpop.f32.mrb[0].mxu0
          %v1530 = vadd.f32 %v1446, %v1529
          %v1531 = vpop.f32.mrb[0].mxu0
          %v1532 = vpop.f32.mrb[0].mxu0
          %v1533 = vadd.f32 %v1446, %v1532
          %v1534 = vpop.f32.mrb[0].mxu0
          %1535 = vmatprep.mubr.bf16.mxu0 0
          %1536 = vmatmul.mubr.bf16.gmra.mrb[0].mxu0 %v1475
          %v1537 = vpop.f32.mrb[0].mxu0
          %v1538 = vadd.f32 %v1446, %v1537
          %v1539 = vpop.f32.mrb[0].mxu0
          %v1540 = vpop.f32.mrb[0].mxu0
          %v1541 = vadd.f32 %v1446, %v1540
          %v1542 = vpop.f32.mrb[0].mxu0
          %1543 = vmatprep.mubr.bf16.mxu0 0
          %1544 = vmatmul.mubr.bf16.gmra.mrb[0].mxu0 %v1478
          %v1545 = vpop.f32.mrb[0].mxu0
          %v1546 = vadd.f32 %v1446, %v1545
          %v1547 = vpop.f32.mrb[0].mxu0
          %v1548 = vpop.f32.mrb[0].mxu0
          %v1549 = vadd.f32 %v1446, %v1548
          %v1550 = vpop.f32.mrb[0].mxu0
          %1551 = vmatprep.mubr.bf16.mxu0 0
          %1552 = vmatmul.mubr.bf16.gmra.mrb[0].mxu0 %v1481
          %v1553 = vpop.f32.mrb[0].mxu0
          %v1554 = vadd.f32 %v1446, %v1553
          %v1555 = vpop.f32.mrb[0].mxu0
          %v1556 = vpop.f32.mrb[0].mxu0
          %v1557 = vadd.f32 %v1446, %v1556
          %v1558 = vpop.f32.mrb[0].mxu0
          %1559 = vmatprep.mubr.bf16.mxu0 0
          %1560 = vmatmul.mubr.bf16.gmra.mrb[0].mxu0 %v1484
          %v1561 = vpop.f32.mrb[0].mxu0
          %v1562 = vadd.f32 %v1446, %v1561
          %v1563 = vpop.f32.mrb[0].mxu0
          %v1564 = vpop.f32.mrb[0].mxu0
          %v1565 = vadd.f32 %v1446, %v1564
          %v1566 = vpop.f32.mrb[0].mxu0
          %1567 = vmatprep.mubr.bf16.mxu0 0
          %1568 = vmatmul.mubr.bf16.gmra.mrb[0].mxu0 %v1487
          %v1569 = vpop.f32.mrb[0].mxu0
          %v1570 = vadd.f32 %v1446, %v1569
          %v1571 = vpop.f32.mrb[0].mxu0
          %v1572 = vpop.f32.mrb[0].mxu0
          %v1573 = vadd.f32 %v1446, %v1572
          %v1574 = vpop.f32.mrb[0].mxu0
          %1575 = vmatprep.mubr.bf16.mxu0 0
          %1576 = vmatmul.mubr.bf16.gmra.mrb[0].mxu0 %v1490
          %v1577 = vpop.f32.mrb[0].mxu0
          %v1578 = vadd.f32 %v1446, %v1577
          %v1579 = vpop.f32.mrb[0].mxu0
          %v1580 = vpop.f32.mrb[0].mxu0
          %v1581 = vadd.f32 %v1446, %v1580
          %v1582 = vpop.f32.mrb[0].mxu0
          %1583 = vmatprep.mubr.bf16.mxu0 0
          %1584 = vmatmul.mubr.bf16.gmra.mrb[0].mxu0 %v1493
          %v1585 = vpop.f32.mrb[0].mxu0
          %v1586 = vadd.f32 %v1446, %v1585
          %v1587 = vpop.f32.mrb[0].mxu0
          %v1588 = vpop.f32.mrb[0].mxu0
          %v1589 = vadd.f32 %v1446, %v1588
          %v1590 = vpop.f32.mrb[0].mxu0
          %1591 = vdwg.mxu0
          %v1592 = vpack.c.bf16 %v1533, %v1530
          %v1593 = vpack.c.bf16 %v1541, %v1538
          %v1594 = vpack.c.bf16 %v1549, %v1546
          %v1595 = vpack.c.bf16 %v1557, %v1554
          %v1596 = vpack.c.bf16 %v1565, %v1562
          %v1597 = vpack.c.bf16 %v1573, %v1570
          %v1598 = vpack.c.bf16 %v1581, %v1578
          %v1599 = vpack.c.bf16 %v1589, %v1586
          %v1608 = vunpack.c.l.b16 %v1592
          %v1609 = vunpack.c.h.b16 %v1592
          %v1610 = vunpack.c.l.b16 %v1593
          %v1611 = vunpack.c.h.b16 %v1593
          %v1612 = vunpack.c.l.b16 %v1594
          %v1613 = vunpack.c.h.b16 %v1594
          %v1614 = vunpack.c.l.b16 %v1595
          %v1615 = vunpack.c.h.b16 %v1595
          %v1616 = vunpack.c.l.b16 %v1596
          %v1617 = vunpack.c.h.b16 %v1596
          %v1618 = vunpack.c.l.b16 %v1597
          %v1619 = vunpack.c.h.b16 %v1597
          %v1620 = vunpack.c.l.b16 %v1598
          %v1621 = vunpack.c.h.b16 %v1598
          %v1622 = vunpack.c.l.b16 %v1599
          %v1623 = vunpack.c.h.b16 %v1599
          %v1624 = vpack.c.b16 %v1608, %v1608
          %v1625 = vpack.c.b16 %v1609, %v1609
          %v1626 = vpack.c.b16 %v1610, %v1610
          %v1627 = vpack.c.b16 %v1611, %v1611
          %v1628 = vpack.c.b16 %v1612, %v1612
          %v1629 = vpack.c.b16 %v1613, %v1613
          %v1630 = vpack.c.b16 %v1614, %v1614
          %v1631 = vpack.c.b16 %v1615, %v1615
          %v1632 = vpack.c.b16 %v1616, %v1616
          %v1633 = vpack.c.b16 %v1617, %v1617
          %v1634 = vpack.c.b16 %v1618, %v1618
          %v1635 = vpack.c.b16 %v1619, %v1619
          %v1636 = vpack.c.b16 %v1620, %v1620
          %v1637 = vpack.c.b16 %v1621, %v1621
          %v1638 = vpack.c.b16 %v1622, %v1622
          %v1639 = vpack.c.b16 %v1623, %v1623
          %1656 = vst [vmem:[%s217] sm:$0xf] %v1624
          %1657 = vst [vmem:[%s217 + $0x4] sm:$0xf] %v1625
          %1658 = vst [vmem:[%s217 + $0x8] sm:$0xf] %v1626
          %1659 = vst [vmem:[%s217 + $0xc] sm:$0xf] %v1627
          %1660 = vst [vmem:[%s217 + $0x10] sm:$0xf] %v1628
          %1661 = vst [vmem:[%s217 + $0x14] sm:$0xf] %v1629
          %1662 = vst [vmem:[%s217 + $0x18] sm:$0xf] %v1630
          %1663 = vst [vmem:[%s217 + $0x1c] sm:$0xf] %v1631
          %1664 = vst [vmem:[%s217 + $0x20] sm:$0xf] %v1632
          %1665 = vst [vmem:[%s217 + $0x24] sm:$0xf] %v1633
          %1666 = vst [vmem:[%s217 + $0x28] sm:$0xf] %v1634
          %1667 = vst [vmem:[%s217 + $0x2c] sm:$0xf] %v1635
          %1668 = vst [vmem:[%s217 + $0x30] sm:$0xf] %v1636
          %1669 = vst [vmem:[%s217 + $0x34] sm:$0xf] %v1637
          %1670 = vst [vmem:[%s217 + $0x38] sm:$0xf] %v1638
          %1671 = vst [vmem:[%s217 + $0x3c] sm:$0xf] %v1639
        $region56: #{tpu_custom_call.1} parent=35 // pred_fallthru
          _
        %s1672 = sand.u32 %s135, 1
        %s1673 = scalar_lea.sflag [#allocation7], %s1672
        %s1674 = sand.u32 %s135, 1
        %s1675 = smul.addr %s1674, 64
        %s1676 = scalar_lea.vmem [#allocation6], %s1675
        // Predicated region
        $region61: #{tpu_custom_call.1} parent=35 // pred_check
          %p1677 = pneg %p145
        $region62: #{tpu_custom_call.1} parent=35 // pred_check_branch
          %1679 = sbr.rel (%p1677) target = $region64
        $region63: #{tpu_custom_call.1} parent=35 // pred_region
          %p1680 = scmp.eq.s32.totalorder %s22, 2
          %s1681 = scalar_select %p1680, %s23, 0
          %s1682 = smul.u32 16, %s1681
          %s1684 = ssub.s32 1024, 1024
          %1685 = vsyncadd %s1673, %s1684
          %s1686 = smul.addr %s1682, 64
          %s1687 = scalar_lea.hbm %s4, %s1686
          %s1688 = sshll.u32 %s1676, 4
          %s1689 = int_to_ptr.vmem [resolvable:$true] %s1688
          %1694 = dma.vmem_to_hbm [thread:$0]  %s1689, 1024, %s1687, %s1673, 64, 64, 4
        $region64: #{tpu_custom_call.1} parent=35 // pred_fallthru
          _
      $region36: #{tpu_custom_call.1} parent=5 // pred_fallthru
        _
      %p1695 = scmp.le.s32.totalorder 2, %s13
      // Predicated region
      $region65: #{tpu_custom_call.1} parent=5 // pred_check
        %p1696 = pneg %p1695
      $region66: #{tpu_custom_call.1} parent=5 // pred_check_branch
        %1698 = sbr.rel (%p1696) target = $region68
      $region67: #{tpu_custom_call.1} parent=5 // pred_region
        %s1699 = ssub.s32 %s13, 2
        // Predicated region
        $region69: #{tpu_custom_call.1} parent=67 // pred_check
          %p1700 = pneg %p151
        $region70: #{tpu_custom_call.1} parent=67 // pred_check_branch
          %1702 = sbr.rel (%p1700) target = $region72
        $region71: #{tpu_custom_call.1} parent=67 // pred_region
          %s1703 = sand.u32 %s136, 1
          %s1704 = scalar_lea.sflag [#allocation7], %s1703
          %s1705 = sand.u32 %s136, 1
          %s1706 = smul.addr %s1705, 64
          %s1707 = scalar_lea.vmem [#allocation6], %s1706
          %1708 = dma.done %s1704, 1024
        $region72: #{tpu_custom_call.1} parent=67 // pred_fallthru
          _
      $region68: #{tpu_custom_call.1} parent=5 // pred_fallthru
        _
    $region6: #{tpu_custom_call.1} parent=1 // loop_footer
      %s17 = sadd.s32 1, %s13
    $region7: #{tpu_custom_call.1} parent=1 // loop_footer_branch
      %12 = sbr.rel target = $region3
    $region8: #{tpu_custom_call.1} parent=1 // loop_exit
      _
    %1709 = vsyncpa [#allocation7], 1
    %s1710 = scalar_lea.sflag [#allocation7], 1
    %1711 = vsyncpa %s1710, 1

</llo_original>
